<compile_context>
chip_gen: v5e
topology: v5e:2x2
jax: 0.10.0
libtpu: 0.0.40
codegen_flags: <defaults>
</compile_context>

<pallas_src>
import jax
import jax.numpy as jnp
from jax.experimental import pallas as pl
from jax.experimental.pallas import tpu as pltpu


def _make_kernel(T, B, H):
    H2, H3, H4, H6 = 2 * H, 3 * H, 4 * H, 6 * H

    def kernel(xp_ref, wx0_ref, b0_ref, whh0_ref, wih1_ref, whh1_ref, b1_ref,
               w_lab_ref, b_lab_ref, out_ref, gin0_ref, y0_ref, gin1_ref):
        # ---- layer 0: batched input projection, both directions, bias folded.
        # Row block s already holds [gates_fwd(t=s) | gates_bwd(t=T-1-s)], so the
        # recurrence reads one contiguous (B, 8H) block per step.
        gin0_ref[...] = (jnp.dot(xp_ref[...], wx0_ref[...],
                                 preferred_element_type=jnp.float32)
                         + b0_ref[...])

        whh0 = whh0_ref[...]            # block-diagonal (2H, 8H), resident all T steps

        # ---- fused fwd+bwd recurrence, fully unrolled (T small & fixed) ----
        # step 0 peeled: h = c = 0 -> no h@whh matmul, no f*c term.
        g = gin0_ref[pl.ds(0, B), :]
        sg = jax.nn.sigmoid(g[:, :H6])
        tg = jnp.tanh(g[:, H6:])
        c_pair = sg[:, :H2] * tg                       # i_pair * g_pair
        h_pair = sg[:, H4:H6] * jnp.tanh(c_pair)       # o_pair * tanh(c)
        y0_ref[pl.ds(0, B), pl.ds(0, H)] = h_pair[:, :H]            # fwd hidden @ t=0
        y0_ref[pl.ds((T - 1) * B, B), pl.ds(H, H)] = h_pair[:, H:]  # bwd hidden @ t=T-1

        for s in range(1, T):
            g = (gin0_ref[pl.ds(s * B, B), :]
                 + jnp.dot(h_pair, whh0, preferred_element_type=jnp.float32))
            sg = jax.nn.sigmoid(g[:, :H6])             # i_f|i_b|f_f|f_b|o_f|o_b
            tg = jnp.tanh(g[:, H6:])                   # g_f|g_b
            c_pair = sg[:, H2:H4] * c_pair + sg[:, :H2] * tg
            h_pair = sg[:, H4:H6] * jnp.tanh(c_pair)
            y0_ref[pl.ds(s * B, B), pl.ds(0, H)] = h_pair[:, :H]            # fwd @ t=s
            y0_ref[pl.ds((T - 1 - s) * B, B), pl.ds(H, H)] = h_pair[:, H:]  # bwd @ t=T-1-s

        # ---- layer 1 (reverse dir): batched input projection over all steps ----
        gin1_ref[...] = (jnp.dot(y0_ref[...], wih1_ref[...],
                                 preferred_element_type=jnp.float32)
                         + b1_ref[...])

        whh1 = whh1_ref[...]

        # step 0 peeled (t = T-1): h1 = c1 = 0
        g1 = gin1_ref[pl.ds((T - 1) * B, B), :]
        s1 = jax.nn.sigmoid(g1[:, :H3])                # i|f|o
        t1 = jnp.tanh(g1[:, H3:])                      # g
        c1 = s1[:, :H] * t1
        h1 = s1[:, H2:H3] * jnp.tanh(c1)
        for s in range(1, T):
            t = T - 1 - s
            g1 = (gin1_ref[pl.ds(t * B, B), :]
                  + jnp.dot(h1, whh1, preferred_element_type=jnp.float32))
            s1 = jax.nn.sigmoid(g1[:, :H3])
            t1 = jnp.tanh(g1[:, H3:])
            c1 = s1[:, H:H2] * c1 + s1[:, :H] * t1
            h1 = s1[:, H2:H3] * jnp.tanh(c1)

        # ---- Linear + LogSoftmax(dim=1) ----
        logits = (jnp.dot(h1, w_lab_ref[...], preferred_element_type=jnp.float32)
                  + b_lab_ref[...])
        m = jnp.max(logits, axis=-1, keepdims=True)
        z = logits - m
        out_ref[...] = z - jnp.log(jnp.sum(jnp.exp(z), axis=-1, keepdims=True))

    return kernel


def _split_ifgo(w, H):
    """Split PyTorch gate column blocks i|f|g|o."""
    return w[:, 0:H], w[:, H:2 * H], w[:, 2 * H:3 * H], w[:, 3 * H:4 * H]


def prepare_params(p):
    """One-time weight repack (hoisted out of the jitted forward).

    Layer 0 is packed for the fused fwd/bwd recurrence with gate column layout
    i_f|i_b|f_f|f_b|o_f|o_b|g_f|g_b (block-diagonal by direction); layer 1 is
    reordered i|f|g|o -> i|f|o|g so one sigmoid covers 3H and one tanh covers H.
    """
    H = p["whh_f0"].shape[0]
    E = p["wih_f0"].shape[0]
    split = lambda w: _split_ifgo(w, H)

    # layer-0 input weights: block-diagonal over [x(s) | x(T-1-s)] rows.
    i_f, f_f, g_f, o_f = split(p["wih_f0"])
    i_b, f_b, g_b, o_b = split(p["wih_b0"])
    zE = jnp.zeros((E, H), jnp.float32)
    wx0 = jnp.concatenate([
        jnp.concatenate([i_f, zE, f_f, zE, o_f, zE, g_f, zE], axis=1),  # rows <- x(s)
        jnp.concatenate([zE, i_b, zE, f_b, zE, o_b, zE, g_b], axis=1),  # rows <- x(T-1-s)
    ], axis=0)                                                           # (2E, 8H)

    bi_f, bf_f, bg_f, bo_f = split(p["b_f0"])
    bi_b, bf_b, bg_b, bo_b = split(p["b_b0"])
    b0 = jnp.concatenate([bi_f, bi_b, bf_f, bf_b, bo_f, bo_b, bg_f, bg_b],
                         axis=1)                                         # (1, 8H)

    # layer-0 recurrent weights: block-diagonal over h_pair = [hf | hb] rows.
    hi_f, hf_f, hg_f, ho_f = split(p["whh_f0"])
    hi_b, hf_b, hg_b, ho_b = split(p["whh_b0"])
    zH = jnp.zeros((H, H), jnp.float32)
    whh0 = jnp.concatenate([
        jnp.concatenate([hi_f, zH, hf_f, zH, ho_f, zH, hg_f, zH], axis=1),  # rows <- hf
        jnp.concatenate([zH, hi_b, zH, hf_b, zH, ho_b, zH, hg_b], axis=1),  # rows <- hb
    ], axis=0)                                                              # (2H, 8H)

    def r_ifog(w):  # i|f|g|o -> i|f|o|g
        i, f, g, o = split(w)
        return jnp.concatenate([i, f, o, g], axis=1)

    packed = {
        "embedding": p["embedding"].astype(jnp.float32),
        "wx0": wx0, "b0": b0, "whh0": whh0,
        "wih1": r_ifog(p["wih_b1"]),   # (2H, 4H)
        "whh1": r_ifog(p["whh_b1"]),   # (H, 4H)
        "b1": r_ifog(p["b_b1"]),       # (1, 4H)
        "w_lab": p["w_lab"], "b_lab": p["b_lab"],
    }
    return jax.tree_util.tree_map(jnp.asarray, packed)


@jax.jit
def lstm_classifier_forward(tokens, packed):
    H = packed["whh1"].shape[0]
    O = packed["w_lab"].shape[1]

    # Embedding lookup + permute(1,0,2) (time-major) done in plain JAX.
    # TODO(synk): the nn.Embedding gather stays in the XLA wrapper; an in-kernel
    #             DMA gather is not worth it at these shapes.
    x = jnp.take(packed["embedding"], tokens, axis=0)            # (B, T, E)
    x = jnp.transpose(x, (1, 0, 2)).astype(jnp.float32)          # (T, B, E)
    T, B, E = x.shape
    # Pair each step with its time-reversed partner: x_pair[s] = [x(s) | x(T-1-s)],
    # so the single batched projection yields contiguous per-step gate rows.
    x_pair = jnp.concatenate([x, x[::-1]], axis=-1).reshape(T * B, 2 * E)

    args = (x_pair, packed["wx0"], packed["b0"], packed["whh0"],
            packed["wih1"], packed["whh1"], packed["b1"],
            packed["w_lab"], packed["b_lab"])
    in_specs = [pl.BlockSpec(memory_space=pltpu.MemorySpace.VMEM) for _ in args]

    return pl.pallas_call(
        _make_kernel(T, B, H),
        out_shape=jax.ShapeDtypeStruct((B, O), jnp.float32),
        in_specs=in_specs,
        out_specs=pl.BlockSpec(memory_space=pltpu.MemorySpace.VMEM),
        scratch_shapes=[
            pltpu.VMEM((T * B, 8 * H), jnp.float32),   # layer-0 gate inputs (fwd|bwd-rev)
            pltpu.VMEM((T * B, 2 * H), jnp.float32),   # layer-0 hiddens [hf | hb]
            pltpu.VMEM((T * B, 4 * H), jnp.float32),   # layer-1 gate inputs
        ],
    )(*args)


def init_params(key, vocab, emb_dim, hidden, out_dim):
    """Deterministic parameter init mimicking PyTorch defaults (gate order i|f|g|o)."""
    keys = jax.random.split(key, 16)
    k = 1.0 / (hidden ** 0.5)

    def u(kk, shape):
        return jax.random.uniform(kk, shape, jnp.float32, -k, k)

    p = {}
    p["embedding"] = jax.random.normal(keys[0], (vocab, emb_dim), jnp.float32)
    # layer 0, forward / backward (input dim = emb_dim)
    p["wih_f0"] = u(keys[1], (emb_dim, 4 * hidden))
    p["whh_f0"] = u(keys[2], (hidden, 4 * hidden))
    p["b_f0"] = u(keys[3], (1, 4 * hidden)) + u(keys[4], (1, 4 * hidden))  # b_ih + b_hh
    p["wih_b0"] = u(keys[5], (emb_dim, 4 * hidden))
    p["whh_b0"] = u(keys[6], (hidden, 4 * hidden))
    p["b_b0"] = u(keys[7], (1, 4 * hidden)) + u(keys[8], (1, 4 * hidden))
    # layer 1, backward direction (input dim = 2*hidden, bidirectional layer 0)
    p["wih_b1"] = u(keys[9], (2 * hidden, 4 * hidden))
    p["whh_b1"] = u(keys[10], (hidden, 4 * hidden))
    p["b_b1"] = u(keys[11], (1, 4 * hidden)) + u(keys[12], (1, 4 * hidden))
    # label Linear(hidden, out_dim)
    p["w_lab"] = jax.random.uniform(keys[13], (hidden, out_dim), jnp.float32, -k, k)
    p["b_lab"] = jax.random.uniform(keys[14], (1, out_dim), jnp.float32, -k, k)
    return p


def reference_forward(tokens, params):
    """Pure-JAX reference of the same math (PyTorch gate order), for checking."""
    x = jnp.take(params["embedding"], tokens, axis=0)
    x = jnp.transpose(x, (1, 0, 2)).astype(jnp.float32)
    T, B, _ = x.shape
    H = params["whh_f0"].shape[0]

    def step(x_t, h, c, wih, whh, b):
        g = x_t @ wih + h @ whh + b
        i = jax.nn.sigmoid(g[:, :H]); f = jax.nn.sigmoid(g[:, H:2 * H])
        gg = jnp.tanh(g[:, 2 * H:3 * H]); o = jax.nn.sigmoid(g[:, 3 * H:])
        c = f * c + i * gg
        h = o * jnp.tanh(c)
        return h, c

    def run(xseq, wih, whh, b, reverse):
        h = jnp.zeros((B, H), jnp.float32); c = jnp.zeros((B, H), jnp.float32)
        out = [None] * T
        order = range(T - 1, -1, -1) if reverse else range(T)
        for t in order:
            h, c = step(xseq[t], h, c, wih, whh, b)
            out[t] = h
        return jnp.stack(out, axis=0), h

    yf, _ = run(x, params["wih_f0"], params["whh_f0"], params["b_f0"], False)
    yb, _ = run(x, params["wih_b0"], params["whh_b0"], params["b_b0"], True)
    y0 = jnp.concatenate([yf, yb], axis=-1)
    _, h_last = run(y0, params["wih_b1"], params["whh_b1"], params["b_b1"], True)
    logits = h_last @ params["w_lab"] + params["b_lab"]
    return jax.nn.log_softmax(logits, axis=1)


if __name__ == "__main__":
    # batch=8, seq=8, vocab=64, embedding=32, hidden=32, output=8
    B, T, V, E, H, O = 8, 8, 64, 32, 32, 8
    key = jax.random.PRNGKey(0)
    kp, kt = jax.random.split(key)
    params = init_params(kp, V, E, H, O)
    tokens = jax.random.randint(kt, (B, T), 0, V, dtype=jnp.int32)

    packed = prepare_params(params)          # one-time repack, outside the jitted forward
    out = lstm_classifier_forward(tokens, packed)
    out = jax.block_until_ready(out)

    ref = reference_forward(tokens, params)
    assert out.shape == (B, O)
    assert bool(jnp.allclose(out, ref, atol=1e-4, rtol=1e-4)), "mismatch vs reference"
    print("KERNEL_OK")
</pallas_src>

<mosaic_0001>
module attributes {stable_mosaic.version = 11 : i64} {
  func.func @kernel(%arg0: memref<64x64xf32, #tpu.memory_space<vmem>>, %arg1: memref<64x256xf32, #tpu.memory_space<vmem>>, %arg2: memref<1x256xf32, #tpu.memory_space<vmem>>, %arg3: memref<64x256xf32, #tpu.memory_space<vmem>>, %arg4: memref<64x128xf32, #tpu.memory_space<vmem>>, %arg5: memref<32x128xf32, #tpu.memory_space<vmem>>, %arg6: memref<1x128xf32, #tpu.memory_space<vmem>>, %arg7: memref<32x8xf32, #tpu.memory_space<vmem>>, %arg8: memref<1x8xf32, #tpu.memory_space<vmem>>, %arg9: memref<8x8xf32, #tpu.memory_space<vmem>>, %arg10: memref<64x256xf32, #tpu.memory_space<vmem>>, %arg11: memref<64x64xf32, #tpu.memory_space<vmem>>, %arg12: memref<64x128xf32, #tpu.memory_space<vmem>>) attributes {dimension_semantics = [], scalar_prefetch = 0 : i64, scratch_operands = 3 : i64, tpu.core_type = #tpu.core_type<tc>} {
    %c0 = arith.constant 0 : index
    %c0_0 = arith.constant 0 : index
    %0 = vector.load %arg0[%c0, %c0_0] : memref<64x64xf32, #tpu.memory_space<vmem>>, vector<64x64xf32>
    %c0_1 = arith.constant 0 : index
    %c0_2 = arith.constant 0 : index
    %1 = vector.load %arg1[%c0_1, %c0_2] : memref<64x256xf32, #tpu.memory_space<vmem>>, vector<64x256xf32>
    %cst = arith.constant dense<0.000000e+00> : vector<64x256xf32>
    %2 = tpu.matmul %0, %1, %cst {dimension_numbers = #tpu.dot_dimension_numbers<[1], [0], [0], [1], [0, 0, 1, 1], [], []>} : vector<64x64xf32>, vector<64x256xf32>, vector<64x256xf32> -> vector<64x256xf32>
    %c0_3 = arith.constant 0 : index
    %c0_4 = arith.constant 0 : index
    %3 = vector.load %arg2[%c0_3, %c0_4] : memref<1x256xf32, #tpu.memory_space<vmem>>, vector<1x256xf32>
    %4 = vector.broadcast %3 : vector<1x256xf32> to vector<64x256xf32>
    %5 = arith.addf %2, %4 : vector<64x256xf32>
    %c0_5 = arith.constant 0 : index
    %c0_6 = arith.constant 0 : index
    %6 = vector.load %arg10[%c0_5, %c0_6] : memref<64x256xf32, #tpu.memory_space<vmem>>, vector<64x256xf32>
    tpu.vector_store %arg10[%c0_5, %c0_6], %5 {strides = array<i32>} : memref<64x256xf32, #tpu.memory_space<vmem>>, vector<64x256xf32>,
    %c0_7 = arith.constant 0 : index
    %c0_8 = arith.constant 0 : index
    %7 = vector.load %arg3[%c0_7, %c0_8] : memref<64x256xf32, #tpu.memory_space<vmem>>, vector<64x256xf32>
    %c0_9 = arith.constant 0 : index
    %c0_10 = arith.constant 0 : index
    %8 = vector.load %arg10[%c0_9, %c0_10] : memref<64x256xf32, #tpu.memory_space<vmem>>, vector<8x256xf32>
    %9 = vector.extract_strided_slice %8 {offsets = [0, 0], sizes = [8, 192], strides = [1, 1]} : vector<8x256xf32> to vector<8x192xf32>
    %10 = arith.negf %9 : vector<8x192xf32>
    %11 = math.exp %10 : vector<8x192xf32>
    %cst_11 = arith.constant 1.000000e+00 : f32
    %12 = vector.broadcast %cst_11 : f32 to vector<8x192xf32>
    %13 = arith.addf %12, %11 : vector<8x192xf32>
    %14 = arith.divf %12, %13 : vector<8x192xf32>
    %15 = vector.extract_strided_slice %8 {offsets = [0, 192], sizes = [8, 64], strides = [1, 1]} : vector<8x256xf32> to vector<8x64xf32>
    %16 = math.tanh %15 : vector<8x64xf32>
    %17 = vector.extract_strided_slice %14 {offsets = [0, 0], sizes = [8, 64], strides = [1, 1]} : vector<8x192xf32> to vector<8x64xf32>
    %18 = arith.mulf %17, %16 : vector<8x64xf32>
    %19 = vector.extract_strided_slice %14 {offsets = [0, 128], sizes = [8, 64], strides = [1, 1]} : vector<8x192xf32> to vector<8x64xf32>
    %20 = math.tanh %18 : vector<8x64xf32>
    %21 = arith.mulf %19, %20 : vector<8x64xf32>
    %22 = vector.extract_strided_slice %21 {offsets = [0, 0], sizes = [8, 32], strides = [1, 1]} : vector<8x64xf32> to vector<8x32xf32>
    %c0_12 = arith.constant 0 : index
    %c0_13 = arith.constant 0 : index
    %23 = vector.load %arg11[%c0_12, %c0_13] : memref<64x64xf32, #tpu.memory_space<vmem>>, vector<8x32xf32>
    tpu.vector_store %arg11[%c0_12, %c0_13], %22 {strides = array<i32>} : memref<64x64xf32, #tpu.memory_space<vmem>>, vector<8x32xf32>,
    %24 = vector.extract_strided_slice %21 {offsets = [0, 32], sizes = [8, 32], strides = [1, 1]} : vector<8x64xf32> to vector<8x32xf32>
    %c56 = arith.constant 56 : index
    %c32 = arith.constant 32 : index
    %25 = vector.load %arg11[%c56, %c32] : memref<64x64xf32, #tpu.memory_space<vmem>>, vector<8x32xf32>
    tpu.vector_store %arg11[%c56, %c32], %24 {strides = array<i32>} : memref<64x64xf32, #tpu.memory_space<vmem>>, vector<8x32xf32>,
    %c8 = arith.constant 8 : index
    %c0_14 = arith.constant 0 : index
    %26 = vector.load %arg10[%c8, %c0_14] : memref<64x256xf32, #tpu.memory_space<vmem>>, vector<8x256xf32>
    %cst_15 = arith.constant dense<0.000000e+00> : vector<8x256xf32>
    %27 = tpu.matmul %21, %7, %cst_15 {dimension_numbers = #tpu.dot_dimension_numbers<[1], [0], [0], [1], [0, 0, 1, 1], [], []>} : vector<8x64xf32>, vector<64x256xf32>, vector<8x256xf32> -> vector<8x256xf32>
    %28 = arith.addf %26, %27 : vector<8x256xf32>
    %29 = vector.extract_strided_slice %28 {offsets = [0, 0], sizes = [8, 192], strides = [1, 1]} : vector<8x256xf32> to vector<8x192xf32>
    %30 = arith.negf %29 : vector<8x192xf32>
    %31 = math.exp %30 : vector<8x192xf32>
    %cst_16 = arith.constant 1.000000e+00 : f32
    %32 = vector.broadcast %cst_16 : f32 to vector<8x192xf32>
    %33 = arith.addf %32, %31 : vector<8x192xf32>
    %34 = arith.divf %32, %33 : vector<8x192xf32>
    %35 = vector.extract_strided_slice %28 {offsets = [0, 192], sizes = [8, 64], strides = [1, 1]} : vector<8x256xf32> to vector<8x64xf32>
    %36 = math.tanh %35 : vector<8x64xf32>
    %37 = vector.extract_strided_slice %34 {offsets = [0, 64], sizes = [8, 64], strides = [1, 1]} : vector<8x192xf32> to vector<8x64xf32>
    %38 = arith.mulf %37, %18 : vector<8x64xf32>
    %39 = vector.extract_strided_slice %34 {offsets = [0, 0], sizes = [8, 64], strides = [1, 1]} : vector<8x192xf32> to vector<8x64xf32>
    %40 = arith.mulf %39, %36 : vector<8x64xf32>
    %41 = arith.addf %38, %40 : vector<8x64xf32>
    %42 = vector.extract_strided_slice %34 {offsets = [0, 128], sizes = [8, 64], strides = [1, 1]} : vector<8x192xf32> to vector<8x64xf32>
    %43 = math.tanh %41 : vector<8x64xf32>
    %44 = arith.mulf %42, %43 : vector<8x64xf32>
    %45 = vector.extract_strided_slice %44 {offsets = [0, 0], sizes = [8, 32], strides = [1, 1]} : vector<8x64xf32> to vector<8x32xf32>
    %c8_17 = arith.constant 8 : index
    %c0_18 = arith.constant 0 : index
    %46 = vector.load %arg11[%c8_17, %c0_18] : memref<64x64xf32, #tpu.memory_space<vmem>>, vector<8x32xf32>
    tpu.vector_store %arg11[%c8_17, %c0_18], %45 {strides = array<i32>} : memref<64x64xf32, #tpu.memory_space<vmem>>, vector<8x32xf32>,
    %47 = vector.extract_strided_slice %44 {offsets = [0, 32], sizes = [8, 32], strides = [1, 1]} : vector<8x64xf32> to vector<8x32xf32>
    %c48 = arith.constant 48 : index
    %c32_19 = arith.constant 32 : index
    %48 = vector.load %arg11[%c48, %c32_19] : memref<64x64xf32, #tpu.memory_space<vmem>>, vector<8x32xf32>
    tpu.vector_store %arg11[%c48, %c32_19], %47 {strides = array<i32>} : memref<64x64xf32, #tpu.memory_space<vmem>>, vector<8x32xf32>,
    %c16 = arith.constant 16 : index
    %c0_20 = arith.constant 0 : index
    %49 = vector.load %arg10[%c16, %c0_20] : memref<64x256xf32, #tpu.memory_space<vmem>>, vector<8x256xf32>
    %cst_21 = arith.constant dense<0.000000e+00> : vector<8x256xf32>
    %50 = tpu.matmul %44, %7, %cst_21 {dimension_numbers = #tpu.dot_dimension_numbers<[1], [0], [0], [1], [0, 0, 1, 1], [], []>} : vector<8x64xf32>, vector<64x256xf32>, vector<8x256xf32> -> vector<8x256xf32>
    %51 = arith.addf %49, %50 : vector<8x256xf32>
    %52 = vector.extract_strided_slice %51 {offsets = [0, 0], sizes = [8, 192], strides = [1, 1]} : vector<8x256xf32> to vector<8x192xf32>
    %53 = arith.negf %52 : vector<8x192xf32>
    %54 = math.exp %53 : vector<8x192xf32>
    %cst_22 = arith.constant 1.000000e+00 : f32
    %55 = vector.broadcast %cst_22 : f32 to vector<8x192xf32>
    %56 = arith.addf %55, %54 : vector<8x192xf32>
    %57 = arith.divf %55, %56 : vector<8x192xf32>
    %58 = vector.extract_strided_slice %51 {offsets = [0, 192], sizes = [8, 64], strides = [1, 1]} : vector<8x256xf32> to vector<8x64xf32>
    %59 = math.tanh %58 : vector<8x64xf32>
    %60 = vector.extract_strided_slice %57 {offsets = [0, 64], sizes = [8, 64], strides = [1, 1]} : vector<8x192xf32> to vector<8x64xf32>
    %61 = arith.mulf %60, %41 : vector<8x64xf32>
    %62 = vector.extract_strided_slice %57 {offsets = [0, 0], sizes = [8, 64], strides = [1, 1]} : vector<8x192xf32> to vector<8x64xf32>
    %63 = arith.mulf %62, %59 : vector<8x64xf32>
    %64 = arith.addf %61, %63 : vector<8x64xf32>
    %65 = vector.extract_strided_slice %57 {offsets = [0, 128], sizes = [8, 64], strides = [1, 1]} : vector<8x192xf32> to vector<8x64xf32>
    %66 = math.tanh %64 : vector<8x64xf32>
    %67 = arith.mulf %65, %66 : vector<8x64xf32>
    %68 = vector.extract_strided_slice %67 {offsets = [0, 0], sizes = [8, 32], strides = [1, 1]} : vector<8x64xf32> to vector<8x32xf32>
    %c16_23 = arith.constant 16 : index
    %c0_24 = arith.constant 0 : index
    %69 = vector.load %arg11[%c16_23, %c0_24] : memref<64x64xf32, #tpu.memory_space<vmem>>, vector<8x32xf32>
    tpu.vector_store %arg11[%c16_23, %c0_24], %68 {strides = array<i32>} : memref<64x64xf32, #tpu.memory_space<vmem>>, vector<8x32xf32>,
    %70 = vector.extract_strided_slice %67 {offsets = [0, 32], sizes = [8, 32], strides = [1, 1]} : vector<8x64xf32> to vector<8x32xf32>
    %c40 = arith.constant 40 : index
    %c32_25 = arith.constant 32 : index
    %71 = vector.load %arg11[%c40, %c32_25] : memref<64x64xf32, #tpu.memory_space<vmem>>, vector<8x32xf32>
    tpu.vector_store %arg11[%c40, %c32_25], %70 {strides = array<i32>} : memref<64x64xf32, #tpu.memory_space<vmem>>, vector<8x32xf32>,
    %c24 = arith.constant 24 : index
    %c0_26 = arith.constant 0 : index
    %72 = vector.load %arg10[%c24, %c0_26] : memref<64x256xf32, #tpu.memory_space<vmem>>, vector<8x256xf32>
    %cst_27 = arith.constant dense<0.000000e+00> : vector<8x256xf32>
    %73 = tpu.matmul %67, %7, %cst_27 {dimension_numbers = #tpu.dot_dimension_numbers<[1], [0], [0], [1], [0, 0, 1, 1], [], []>} : vector<8x64xf32>, vector<64x256xf32>, vector<8x256xf32> -> vector<8x256xf32>
    %74 = arith.addf %72, %73 : vector<8x256xf32>
    %75 = vector.extract_strided_slice %74 {offsets = [0, 0], sizes = [8, 192], strides = [1, 1]} : vector<8x256xf32> to vector<8x192xf32>
    %76 = arith.negf %75 : vector<8x192xf32>
    %77 = math.exp %76 : vector<8x192xf32>
    %cst_28 = arith.constant 1.000000e+00 : f32
    %78 = vector.broadcast %cst_28 : f32 to vector<8x192xf32>
    %79 = arith.addf %78, %77 : vector<8x192xf32>
    %80 = arith.divf %78, %79 : vector<8x192xf32>
    %81 = vector.extract_strided_slice %74 {offsets = [0, 192], sizes = [8, 64], strides = [1, 1]} : vector<8x256xf32> to vector<8x64xf32>
    %82 = math.tanh %81 : vector<8x64xf32>
    %83 = vector.extract_strided_slice %80 {offsets = [0, 64], sizes = [8, 64], strides = [1, 1]} : vector<8x192xf32> to vector<8x64xf32>
    %84 = arith.mulf %83, %64 : vector<8x64xf32>
    %85 = vector.extract_strided_slice %80 {offsets = [0, 0], sizes = [8, 64], strides = [1, 1]} : vector<8x192xf32> to vector<8x64xf32>
    %86 = arith.mulf %85, %82 : vector<8x64xf32>
    %87 = arith.addf %84, %86 : vector<8x64xf32>
    %88 = vector.extract_strided_slice %80 {offsets = [0, 128], sizes = [8, 64], strides = [1, 1]} : vector<8x192xf32> to vector<8x64xf32>
    %89 = math.tanh %87 : vector<8x64xf32>
    %90 = arith.mulf %88, %89 : vector<8x64xf32>
    %91 = vector.extract_strided_slice %90 {offsets = [0, 0], sizes = [8, 32], strides = [1, 1]} : vector<8x64xf32> to vector<8x32xf32>
    %c24_29 = arith.constant 24 : index
    %c0_30 = arith.constant 0 : index
    %92 = vector.load %arg11[%c24_29, %c0_30] : memref<64x64xf32, #tpu.memory_space<vmem>>, vector<8x32xf32>
    tpu.vector_store %arg11[%c24_29, %c0_30], %91 {strides = array<i32>} : memref<64x64xf32, #tpu.memory_space<vmem>>, vector<8x32xf32>,
    %93 = vector.extract_strided_slice %90 {offsets = [0, 32], sizes = [8, 32], strides = [1, 1]} : vector<8x64xf32> to vector<8x32xf32>
    %c32_31 = arith.constant 32 : index
    %c32_32 = arith.constant 32 : index
    %94 = vector.load %arg11[%c32_31, %c32_32] : memref<64x64xf32, #tpu.memory_space<vmem>>, vector<8x32xf32>
    tpu.vector_store %arg11[%c32_31, %c32_32], %93 {strides = array<i32>} : memref<64x64xf32, #tpu.memory_space<vmem>>, vector<8x32xf32>,
    %c32_33 = arith.constant 32 : index
    %c0_34 = arith.constant 0 : index
    %95 = vector.load %arg10[%c32_33, %c0_34] : memref<64x256xf32, #tpu.memory_space<vmem>>, vector<8x256xf32>
    %cst_35 = arith.constant dense<0.000000e+00> : vector<8x256xf32>
    %96 = tpu.matmul %90, %7, %cst_35 {dimension_numbers = #tpu.dot_dimension_numbers<[1], [0], [0], [1], [0, 0, 1, 1], [], []>} : vector<8x64xf32>, vector<64x256xf32>, vector<8x256xf32> -> vector<8x256xf32>
    %97 = arith.addf %95, %96 : vector<8x256xf32>
    %98 = vector.extract_strided_slice %97 {offsets = [0, 0], sizes = [8, 192], strides = [1, 1]} : vector<8x256xf32> to vector<8x192xf32>
    %99 = arith.negf %98 : vector<8x192xf32>
    %100 = math.exp %99 : vector<8x192xf32>
    %cst_36 = arith.constant 1.000000e+00 : f32
    %101 = vector.broadcast %cst_36 : f32 to vector<8x192xf32>
    %102 = arith.addf %101, %100 : vector<8x192xf32>
    %103 = arith.divf %101, %102 : vector<8x192xf32>
    %104 = vector.extract_strided_slice %97 {offsets = [0, 192], sizes = [8, 64], strides = [1, 1]} : vector<8x256xf32> to vector<8x64xf32>
    %105 = math.tanh %104 : vector<8x64xf32>
    %106 = vector.extract_strided_slice %103 {offsets = [0, 64], sizes = [8, 64], strides = [1, 1]} : vector<8x192xf32> to vector<8x64xf32>
    %107 = arith.mulf %106, %87 : vector<8x64xf32>
    %108 = vector.extract_strided_slice %103 {offsets = [0, 0], sizes = [8, 64], strides = [1, 1]} : vector<8x192xf32> to vector<8x64xf32>
    %109 = arith.mulf %108, %105 : vector<8x64xf32>
    %110 = arith.addf %107, %109 : vector<8x64xf32>
    %111 = vector.extract_strided_slice %103 {offsets = [0, 128], sizes = [8, 64], strides = [1, 1]} : vector<8x192xf32> to vector<8x64xf32>
    %112 = math.tanh %110 : vector<8x64xf32>
    %113 = arith.mulf %111, %112 : vector<8x64xf32>
    %114 = vector.extract_strided_slice %113 {offsets = [0, 0], sizes = [8, 32], strides = [1, 1]} : vector<8x64xf32> to vector<8x32xf32>
    %c32_37 = arith.constant 32 : index
    %c0_38 = arith.constant 0 : index
    %115 = vector.load %arg11[%c32_37, %c0_38] : memref<64x64xf32, #tpu.memory_space<vmem>>, vector<8x32xf32>
    tpu.vector_store %arg11[%c32_37, %c0_38], %114 {strides = array<i32>} : memref<64x64xf32, #tpu.memory_space<vmem>>, vector<8x32xf32>,
    %116 = vector.extract_strided_slice %113 {offsets = [0, 32], sizes = [8, 32], strides = [1, 1]} : vector<8x64xf32> to vector<8x32xf32>
    %c24_39 = arith.constant 24 : index
    %c32_40 = arith.constant 32 : index
    %117 = vector.load %arg11[%c24_39, %c32_40] : memref<64x64xf32, #tpu.memory_space<vmem>>, vector<8x32xf32>
    tpu.vector_store %arg11[%c24_39, %c32_40], %116 {strides = array<i32>} : memref<64x64xf32, #tpu.memory_space<vmem>>, vector<8x32xf32>,
    %c40_41 = arith.constant 40 : index
    %c0_42 = arith.constant 0 : index
    %118 = vector.load %arg10[%c40_41, %c0_42] : memref<64x256xf32, #tpu.memory_space<vmem>>, vector<8x256xf32>
    %cst_43 = arith.constant dense<0.000000e+00> : vector<8x256xf32>
    %119 = tpu.matmul %113, %7, %cst_43 {dimension_numbers = #tpu.dot_dimension_numbers<[1], [0], [0], [1], [0, 0, 1, 1], [], []>} : vector<8x64xf32>, vector<64x256xf32>, vector<8x256xf32> -> vector<8x256xf32>
    %120 = arith.addf %118, %119 : vector<8x256xf32>
    %121 = vector.extract_strided_slice %120 {offsets = [0, 0], sizes = [8, 192], strides = [1, 1]} : vector<8x256xf32> to vector<8x192xf32>
    %122 = arith.negf %121 : vector<8x192xf32>
    %123 = math.exp %122 : vector<8x192xf32>
    %cst_44 = arith.constant 1.000000e+00 : f32
    %124 = vector.broadcast %cst_44 : f32 to vector<8x192xf32>
    %125 = arith.addf %124, %123 : vector<8x192xf32>
    %126 = arith.divf %124, %125 : vector<8x192xf32>
    %127 = vector.extract_strided_slice %120 {offsets = [0, 192], sizes = [8, 64], strides = [1, 1]} : vector<8x256xf32> to vector<8x64xf32>
    %128 = math.tanh %127 : vector<8x64xf32>
    %129 = vector.extract_strided_slice %126 {offsets = [0, 64], sizes = [8, 64], strides = [1, 1]} : vector<8x192xf32> to vector<8x64xf32>
    %130 = arith.mulf %129, %110 : vector<8x64xf32>
    %131 = vector.extract_strided_slice %126 {offsets = [0, 0], sizes = [8, 64], strides = [1, 1]} : vector<8x192xf32> to vector<8x64xf32>
    %132 = arith.mulf %131, %128 : vector<8x64xf32>
    %133 = arith.addf %130, %132 : vector<8x64xf32>
    %134 = vector.extract_strided_slice %126 {offsets = [0, 128], sizes = [8, 64], strides = [1, 1]} : vector<8x192xf32> to vector<8x64xf32>
    %135 = math.tanh %133 : vector<8x64xf32>
    %136 = arith.mulf %134, %135 : vector<8x64xf32>
    %137 = vector.extract_strided_slice %136 {offsets = [0, 0], sizes = [8, 32], strides = [1, 1]} : vector<8x64xf32> to vector<8x32xf32>
    %c40_45 = arith.constant 40 : index
    %c0_46 = arith.constant 0 : index
    %138 = vector.load %arg11[%c40_45, %c0_46] : memref<64x64xf32, #tpu.memory_space<vmem>>, vector<8x32xf32>
    tpu.vector_store %arg11[%c40_45, %c0_46], %137 {strides = array<i32>} : memref<64x64xf32, #tpu.memory_space<vmem>>, vector<8x32xf32>,
    %139 = vector.extract_strided_slice %136 {offsets = [0, 32], sizes = [8, 32], strides = [1, 1]} : vector<8x64xf32> to vector<8x32xf32>
    %c16_47 = arith.constant 16 : index
    %c32_48 = arith.constant 32 : index
    %140 = vector.load %arg11[%c16_47, %c32_48] : memref<64x64xf32, #tpu.memory_space<vmem>>, vector<8x32xf32>
    tpu.vector_store %arg11[%c16_47, %c32_48], %139 {strides = array<i32>} : memref<64x64xf32, #tpu.memory_space<vmem>>, vector<8x32xf32>,
    %c48_49 = arith.constant 48 : index
    %c0_50 = arith.constant 0 : index
    %141 = vector.load %arg10[%c48_49, %c0_50] : memref<64x256xf32, #tpu.memory_space<vmem>>, vector<8x256xf32>
    %cst_51 = arith.constant dense<0.000000e+00> : vector<8x256xf32>
    %142 = tpu.matmul %136, %7, %cst_51 {dimension_numbers = #tpu.dot_dimension_numbers<[1], [0], [0], [1], [0, 0, 1, 1], [], []>} : vector<8x64xf32>, vector<64x256xf32>, vector<8x256xf32> -> vector<8x256xf32>
    %143 = arith.addf %141, %142 : vector<8x256xf32>
    %144 = vector.extract_strided_slice %143 {offsets = [0, 0], sizes = [8, 192], strides = [1, 1]} : vector<8x256xf32> to vector<8x192xf32>
    %145 = arith.negf %144 : vector<8x192xf32>
    %146 = math.exp %145 : vector<8x192xf32>
    %cst_52 = arith.constant 1.000000e+00 : f32
    %147 = vector.broadcast %cst_52 : f32 to vector<8x192xf32>
    %148 = arith.addf %147, %146 : vector<8x192xf32>
    %149 = arith.divf %147, %148 : vector<8x192xf32>
    %150 = vector.extract_strided_slice %143 {offsets = [0, 192], sizes = [8, 64], strides = [1, 1]} : vector<8x256xf32> to vector<8x64xf32>
    %151 = math.tanh %150 : vector<8x64xf32>
    %152 = vector.extract_strided_slice %149 {offsets = [0, 64], sizes = [8, 64], strides = [1, 1]} : vector<8x192xf32> to vector<8x64xf32>
    %153 = arith.mulf %152, %133 : vector<8x64xf32>
    %154 = vector.extract_strided_slice %149 {offsets = [0, 0], sizes = [8, 64], strides = [1, 1]} : vector<8x192xf32> to vector<8x64xf32>
    %155 = arith.mulf %154, %151 : vector<8x64xf32>
    %156 = arith.addf %153, %155 : vector<8x64xf32>
    %157 = vector.extract_strided_slice %149 {offsets = [0, 128], sizes = [8, 64], strides = [1, 1]} : vector<8x192xf32> to vector<8x64xf32>
    %158 = math.tanh %156 : vector<8x64xf32>
    %159 = arith.mulf %157, %158 : vector<8x64xf32>
    %160 = vector.extract_strided_slice %159 {offsets = [0, 0], sizes = [8, 32], strides = [1, 1]} : vector<8x64xf32> to vector<8x32xf32>
    %c48_53 = arith.constant 48 : index
    %c0_54 = arith.constant 0 : index
    %161 = vector.load %arg11[%c48_53, %c0_54] : memref<64x64xf32, #tpu.memory_space<vmem>>, vector<8x32xf32>
    tpu.vector_store %arg11[%c48_53, %c0_54], %160 {strides = array<i32>} : memref<64x64xf32, #tpu.memory_space<vmem>>, vector<8x32xf32>,
    %162 = vector.extract_strided_slice %159 {offsets = [0, 32], sizes = [8, 32], strides = [1, 1]} : vector<8x64xf32> to vector<8x32xf32>
    %c8_55 = arith.constant 8 : index
    %c32_56 = arith.constant 32 : index
    %163 = vector.load %arg11[%c8_55, %c32_56] : memref<64x64xf32, #tpu.memory_space<vmem>>, vector<8x32xf32>
    tpu.vector_store %arg11[%c8_55, %c32_56], %162 {strides = array<i32>} : memref<64x64xf32, #tpu.memory_space<vmem>>, vector<8x32xf32>,
    %c56_57 = arith.constant 56 : index
    %c0_58 = arith.constant 0 : index
    %164 = vector.load %arg10[%c56_57, %c0_58] : memref<64x256xf32, #tpu.memory_space<vmem>>, vector<8x256xf32>
    %cst_59 = arith.constant dense<0.000000e+00> : vector<8x256xf32>
    %165 = tpu.matmul %159, %7, %cst_59 {dimension_numbers = #tpu.dot_dimension_numbers<[1], [0], [0], [1], [0, 0, 1, 1], [], []>} : vector<8x64xf32>, vector<64x256xf32>, vector<8x256xf32> -> vector<8x256xf32>
    %166 = arith.addf %164, %165 : vector<8x256xf32>
    %167 = vector.extract_strided_slice %166 {offsets = [0, 0], sizes = [8, 192], strides = [1, 1]} : vector<8x256xf32> to vector<8x192xf32>
    %168 = arith.negf %167 : vector<8x192xf32>
    %169 = math.exp %168 : vector<8x192xf32>
    %cst_60 = arith.constant 1.000000e+00 : f32
    %170 = vector.broadcast %cst_60 : f32 to vector<8x192xf32>
    %171 = arith.addf %170, %169 : vector<8x192xf32>
    %172 = arith.divf %170, %171 : vector<8x192xf32>
    %173 = vector.extract_strided_slice %166 {offsets = [0, 192], sizes = [8, 64], strides = [1, 1]} : vector<8x256xf32> to vector<8x64xf32>
    %174 = math.tanh %173 : vector<8x64xf32>
    %175 = vector.extract_strided_slice %172 {offsets = [0, 64], sizes = [8, 64], strides = [1, 1]} : vector<8x192xf32> to vector<8x64xf32>
    %176 = arith.mulf %175, %156 : vector<8x64xf32>
    %177 = vector.extract_strided_slice %172 {offsets = [0, 0], sizes = [8, 64], strides = [1, 1]} : vector<8x192xf32> to vector<8x64xf32>
    %178 = arith.mulf %177, %174 : vector<8x64xf32>
    %179 = arith.addf %176, %178 : vector<8x64xf32>
    %180 = vector.extract_strided_slice %172 {offsets = [0, 128], sizes = [8, 64], strides = [1, 1]} : vector<8x192xf32> to vector<8x64xf32>
    %181 = math.tanh %179 : vector<8x64xf32>
    %182 = arith.mulf %180, %181 : vector<8x64xf32>
    %183 = vector.extract_strided_slice %182 {offsets = [0, 0], sizes = [8, 32], strides = [1, 1]} : vector<8x64xf32> to vector<8x32xf32>
    %c56_61 = arith.constant 56 : index
    %c0_62 = arith.constant 0 : index
    %184 = vector.load %arg11[%c56_61, %c0_62] : memref<64x64xf32, #tpu.memory_space<vmem>>, vector<8x32xf32>
    tpu.vector_store %arg11[%c56_61, %c0_62], %183 {strides = array<i32>} : memref<64x64xf32, #tpu.memory_space<vmem>>, vector<8x32xf32>,
    %185 = vector.extract_strided_slice %182 {offsets = [0, 32], sizes = [8, 32], strides = [1, 1]} : vector<8x64xf32> to vector<8x32xf32>
    %c0_63 = arith.constant 0 : index
    %c32_64 = arith.constant 32 : index
    %186 = vector.load %arg11[%c0_63, %c32_64] : memref<64x64xf32, #tpu.memory_space<vmem>>, vector<8x32xf32>
    tpu.vector_store %arg11[%c0_63, %c32_64], %185 {strides = array<i32>} : memref<64x64xf32, #tpu.memory_space<vmem>>, vector<8x32xf32>,
    %c0_65 = arith.constant 0 : index
    %c0_66 = arith.constant 0 : index
    %187 = vector.load %arg11[%c0_65, %c0_66] : memref<64x64xf32, #tpu.memory_space<vmem>>, vector<64x64xf32>
    %c0_67 = arith.constant 0 : index
    %c0_68 = arith.constant 0 : index
    %188 = vector.load %arg4[%c0_67, %c0_68] : memref<64x128xf32, #tpu.memory_space<vmem>>, vector<64x128xf32>
    %cst_69 = arith.constant dense<0.000000e+00> : vector<64x128xf32>
    %189 = tpu.matmul %187, %188, %cst_69 {dimension_numbers = #tpu.dot_dimension_numbers<[1], [0], [0], [1], [0, 0, 1, 1], [], []>} : vector<64x64xf32>, vector<64x128xf32>, vector<64x128xf32> -> vector<64x128xf32>
    %c0_70 = arith.constant 0 : index
    %c0_71 = arith.constant 0 : index
    %190 = vector.load %arg6[%c0_70, %c0_71] : memref<1x128xf32, #tpu.memory_space<vmem>>, vector<1x128xf32>
    %191 = vector.broadcast %190 : vector<1x128xf32> to vector<64x128xf32>
    %192 = arith.addf %189, %191 : vector<64x128xf32>
    %c0_72 = arith.constant 0 : index
    %c0_73 = arith.constant 0 : index
    %193 = vector.load %arg12[%c0_72, %c0_73] : memref<64x128xf32, #tpu.memory_space<vmem>>, vector<64x128xf32>
    tpu.vector_store %arg12[%c0_72, %c0_73], %192 {strides = array<i32>} : memref<64x128xf32, #tpu.memory_space<vmem>>, vector<64x128xf32>,
    %c0_74 = arith.constant 0 : index
    %c0_75 = arith.constant 0 : index
    %194 = vector.load %arg5[%c0_74, %c0_75] : memref<32x128xf32, #tpu.memory_space<vmem>>, vector<32x128xf32>
    %c56_76 = arith.constant 56 : index
    %c0_77 = arith.constant 0 : index
    %195 = vector.load %arg12[%c56_76, %c0_77] : memref<64x128xf32, #tpu.memory_space<vmem>>, vector<8x128xf32>
    %196 = vector.extract_strided_slice %195 {offsets = [0, 0], sizes = [8, 96], strides = [1, 1]} : vector<8x128xf32> to vector<8x96xf32>
    %197 = arith.negf %196 : vector<8x96xf32>
    %198 = math.exp %197 : vector<8x96xf32>
    %cst_78 = arith.constant 1.000000e+00 : f32
    %199 = vector.broadcast %cst_78 : f32 to vector<8x96xf32>
    %200 = arith.addf %199, %198 : vector<8x96xf32>
    %201 = arith.divf %199, %200 : vector<8x96xf32>
    %202 = vector.extract_strided_slice %195 {offsets = [0, 96], sizes = [8, 32], strides = [1, 1]} : vector<8x128xf32> to vector<8x32xf32>
    %203 = math.tanh %202 : vector<8x32xf32>
    %204 = vector.extract_strided_slice %201 {offsets = [0, 0], sizes = [8, 32], strides = [1, 1]} : vector<8x96xf32> to vector<8x32xf32>
    %205 = arith.mulf %204, %203 : vector<8x32xf32>
    %206 = vector.extract_strided_slice %201 {offsets = [0, 64], sizes = [8, 32], strides = [1, 1]} : vector<8x96xf32> to vector<8x32xf32>
    %207 = math.tanh %205 : vector<8x32xf32>
    %208 = arith.mulf %206, %207 : vector<8x32xf32>
    %c48_79 = arith.constant 48 : index
    %c0_80 = arith.constant 0 : index
    %209 = vector.load %arg12[%c48_79, %c0_80] : memref<64x128xf32, #tpu.memory_space<vmem>>, vector<8x128xf32>
    %cst_81 = arith.constant dense<0.000000e+00> : vector<8x128xf32>
    %210 = tpu.matmul %208, %194, %cst_81 {dimension_numbers = #tpu.dot_dimension_numbers<[1], [0], [0], [1], [0, 0, 1, 1], [], []>} : vector<8x32xf32>, vector<32x128xf32>, vector<8x128xf32> -> vector<8x128xf32>
    %211 = arith.addf %209, %210 : vector<8x128xf32>
    %212 = vector.extract_strided_slice %211 {offsets = [0, 0], sizes = [8, 96], strides = [1, 1]} : vector<8x128xf32> to vector<8x96xf32>
    %213 = arith.negf %212 : vector<8x96xf32>
    %214 = math.exp %213 : vector<8x96xf32>
    %cst_82 = arith.constant 1.000000e+00 : f32
    %215 = vector.broadcast %cst_82 : f32 to vector<8x96xf32>
    %216 = arith.addf %215, %214 : vector<8x96xf32>
    %217 = arith.divf %215, %216 : vector<8x96xf32>
    %218 = vector.extract_strided_slice %211 {offsets = [0, 96], sizes = [8, 32], strides = [1, 1]} : vector<8x128xf32> to vector<8x32xf32>
    %219 = math.tanh %218 : vector<8x32xf32>
    %220 = vector.extract_strided_slice %217 {offsets = [0, 32], sizes = [8, 32], strides = [1, 1]} : vector<8x96xf32> to vector<8x32xf32>
    %221 = arith.mulf %220, %205 : vector<8x32xf32>
    %222 = vector.extract_strided_slice %217 {offsets = [0, 0], sizes = [8, 32], strides = [1, 1]} : vector<8x96xf32> to vector<8x32xf32>
    %223 = arith.mulf %222, %219 : vector<8x32xf32>
    %224 = arith.addf %221, %223 : vector<8x32xf32>
    %225 = vector.extract_strided_slice %217 {offsets = [0, 64], sizes = [8, 32], strides = [1, 1]} : vector<8x96xf32> to vector<8x32xf32>
    %226 = math.tanh %224 : vector<8x32xf32>
    %227 = arith.mulf %225, %226 : vector<8x32xf32>
    %c40_83 = arith.constant 40 : index
    %c0_84 = arith.constant 0 : index
    %228 = vector.load %arg12[%c40_83, %c0_84] : memref<64x128xf32, #tpu.memory_space<vmem>>, vector<8x128xf32>
    %cst_85 = arith.constant dense<0.000000e+00> : vector<8x128xf32>
    %229 = tpu.matmul %227, %194, %cst_85 {dimension_numbers = #tpu.dot_dimension_numbers<[1], [0], [0], [1], [0, 0, 1, 1], [], []>} : vector<8x32xf32>, vector<32x128xf32>, vector<8x128xf32> -> vector<8x128xf32>
    %230 = arith.addf %228, %229 : vector<8x128xf32>
    %231 = vector.extract_strided_slice %230 {offsets = [0, 0], sizes = [8, 96], strides = [1, 1]} : vector<8x128xf32> to vector<8x96xf32>
    %232 = arith.negf %231 : vector<8x96xf32>
    %233 = math.exp %232 : vector<8x96xf32>
    %cst_86 = arith.constant 1.000000e+00 : f32
    %234 = vector.broadcast %cst_86 : f32 to vector<8x96xf32>
    %235 = arith.addf %234, %233 : vector<8x96xf32>
    %236 = arith.divf %234, %235 : vector<8x96xf32>
    %237 = vector.extract_strided_slice %230 {offsets = [0, 96], sizes = [8, 32], strides = [1, 1]} : vector<8x128xf32> to vector<8x32xf32>
    %238 = math.tanh %237 : vector<8x32xf32>
    %239 = vector.extract_strided_slice %236 {offsets = [0, 32], sizes = [8, 32], strides = [1, 1]} : vector<8x96xf32> to vector<8x32xf32>
    %240 = arith.mulf %239, %224 : vector<8x32xf32>
    %241 = vector.extract_strided_slice %236 {offsets = [0, 0], sizes = [8, 32], strides = [1, 1]} : vector<8x96xf32> to vector<8x32xf32>
    %242 = arith.mulf %241, %238 : vector<8x32xf32>
    %243 = arith.addf %240, %242 : vector<8x32xf32>
    %244 = vector.extract_strided_slice %236 {offsets = [0, 64], sizes = [8, 32], strides = [1, 1]} : vector<8x96xf32> to vector<8x32xf32>
    %245 = math.tanh %243 : vector<8x32xf32>
    %246 = arith.mulf %244, %245 : vector<8x32xf32>
    %c32_87 = arith.constant 32 : index
    %c0_88 = arith.constant 0 : index
    %247 = vector.load %arg12[%c32_87, %c0_88] : memref<64x128xf32, #tpu.memory_space<vmem>>, vector<8x128xf32>
    %cst_89 = arith.constant dense<0.000000e+00> : vector<8x128xf32>
    %248 = tpu.matmul %246, %194, %cst_89 {dimension_numbers = #tpu.dot_dimension_numbers<[1], [0], [0], [1], [0, 0, 1, 1], [], []>} : vector<8x32xf32>, vector<32x128xf32>, vector<8x128xf32> -> vector<8x128xf32>
    %249 = arith.addf %247, %248 : vector<8x128xf32>
    %250 = vector.extract_strided_slice %249 {offsets = [0, 0], sizes = [8, 96], strides = [1, 1]} : vector<8x128xf32> to vector<8x96xf32>
    %251 = arith.negf %250 : vector<8x96xf32>
    %252 = math.exp %251 : vector<8x96xf32>
    %cst_90 = arith.constant 1.000000e+00 : f32
    %253 = vector.broadcast %cst_90 : f32 to vector<8x96xf32>
    %254 = arith.addf %253, %252 : vector<8x96xf32>
    %255 = arith.divf %253, %254 : vector<8x96xf32>
    %256 = vector.extract_strided_slice %249 {offsets = [0, 96], sizes = [8, 32], strides = [1, 1]} : vector<8x128xf32> to vector<8x32xf32>
    %257 = math.tanh %256 : vector<8x32xf32>
    %258 = vector.extract_strided_slice %255 {offsets = [0, 32], sizes = [8, 32], strides = [1, 1]} : vector<8x96xf32> to vector<8x32xf32>
    %259 = arith.mulf %258, %243 : vector<8x32xf32>
    %260 = vector.extract_strided_slice %255 {offsets = [0, 0], sizes = [8, 32], strides = [1, 1]} : vector<8x96xf32> to vector<8x32xf32>
    %261 = arith.mulf %260, %257 : vector<8x32xf32>
    %262 = arith.addf %259, %261 : vector<8x32xf32>
    %263 = vector.extract_strided_slice %255 {offsets = [0, 64], sizes = [8, 32], strides = [1, 1]} : vector<8x96xf32> to vector<8x32xf32>
    %264 = math.tanh %262 : vector<8x32xf32>
    %265 = arith.mulf %263, %264 : vector<8x32xf32>
    %c24_91 = arith.constant 24 : index
    %c0_92 = arith.constant 0 : index
    %266 = vector.load %arg12[%c24_91, %c0_92] : memref<64x128xf32, #tpu.memory_space<vmem>>, vector<8x128xf32>
    %cst_93 = arith.constant dense<0.000000e+00> : vector<8x128xf32>
    %267 = tpu.matmul %265, %194, %cst_93 {dimension_numbers = #tpu.dot_dimension_numbers<[1], [0], [0], [1], [0, 0, 1, 1], [], []>} : vector<8x32xf32>, vector<32x128xf32>, vector<8x128xf32> -> vector<8x128xf32>
    %268 = arith.addf %266, %267 : vector<8x128xf32>
    %269 = vector.extract_strided_slice %268 {offsets = [0, 0], sizes = [8, 96], strides = [1, 1]} : vector<8x128xf32> to vector<8x96xf32>
    %270 = arith.negf %269 : vector<8x96xf32>
    %271 = math.exp %270 : vector<8x96xf32>
    %cst_94 = arith.constant 1.000000e+00 : f32
    %272 = vector.broadcast %cst_94 : f32 to vector<8x96xf32>
    %273 = arith.addf %272, %271 : vector<8x96xf32>
    %274 = arith.divf %272, %273 : vector<8x96xf32>
    %275 = vector.extract_strided_slice %268 {offsets = [0, 96], sizes = [8, 32], strides = [1, 1]} : vector<8x128xf32> to vector<8x32xf32>
    %276 = math.tanh %275 : vector<8x32xf32>
    %277 = vector.extract_strided_slice %274 {offsets = [0, 32], sizes = [8, 32], strides = [1, 1]} : vector<8x96xf32> to vector<8x32xf32>
    %278 = arith.mulf %277, %262 : vector<8x32xf32>
    %279 = vector.extract_strided_slice %274 {offsets = [0, 0], sizes = [8, 32], strides = [1, 1]} : vector<8x96xf32> to vector<8x32xf32>
    %280 = arith.mulf %279, %276 : vector<8x32xf32>
    %281 = arith.addf %278, %280 : vector<8x32xf32>
    %282 = vector.extract_strided_slice %274 {offsets = [0, 64], sizes = [8, 32], strides = [1, 1]} : vector<8x96xf32> to vector<8x32xf32>
    %283 = math.tanh %281 : vector<8x32xf32>
    %284 = arith.mulf %282, %283 : vector<8x32xf32>
    %c16_95 = arith.constant 16 : index
    %c0_96 = arith.constant 0 : index
    %285 = vector.load %arg12[%c16_95, %c0_96] : memref<64x128xf32, #tpu.memory_space<vmem>>, vector<8x128xf32>
    %cst_97 = arith.constant dense<0.000000e+00> : vector<8x128xf32>
    %286 = tpu.matmul %284, %194, %cst_97 {dimension_numbers = #tpu.dot_dimension_numbers<[1], [0], [0], [1], [0, 0, 1, 1], [], []>} : vector<8x32xf32>, vector<32x128xf32>, vector<8x128xf32> -> vector<8x128xf32>
    %287 = arith.addf %285, %286 : vector<8x128xf32>
    %288 = vector.extract_strided_slice %287 {offsets = [0, 0], sizes = [8, 96], strides = [1, 1]} : vector<8x128xf32> to vector<8x96xf32>
    %289 = arith.negf %288 : vector<8x96xf32>
    %290 = math.exp %289 : vector<8x96xf32>
    %cst_98 = arith.constant 1.000000e+00 : f32
    %291 = vector.broadcast %cst_98 : f32 to vector<8x96xf32>
    %292 = arith.addf %291, %290 : vector<8x96xf32>
    %293 = arith.divf %291, %292 : vector<8x96xf32>
    %294 = vector.extract_strided_slice %287 {offsets = [0, 96], sizes = [8, 32], strides = [1, 1]} : vector<8x128xf32> to vector<8x32xf32>
    %295 = math.tanh %294 : vector<8x32xf32>
    %296 = vector.extract_strided_slice %293 {offsets = [0, 32], sizes = [8, 32], strides = [1, 1]} : vector<8x96xf32> to vector<8x32xf32>
    %297 = arith.mulf %296, %281 : vector<8x32xf32>
    %298 = vector.extract_strided_slice %293 {offsets = [0, 0], sizes = [8, 32], strides = [1, 1]} : vector<8x96xf32> to vector<8x32xf32>
    %299 = arith.mulf %298, %295 : vector<8x32xf32>
    %300 = arith.addf %297, %299 : vector<8x32xf32>
    %301 = vector.extract_strided_slice %293 {offsets = [0, 64], sizes = [8, 32], strides = [1, 1]} : vector<8x96xf32> to vector<8x32xf32>
    %302 = math.tanh %300 : vector<8x32xf32>
    %303 = arith.mulf %301, %302 : vector<8x32xf32>
    %c8_99 = arith.constant 8 : index
    %c0_100 = arith.constant 0 : index
    %304 = vector.load %arg12[%c8_99, %c0_100] : memref<64x128xf32, #tpu.memory_space<vmem>>, vector<8x128xf32>
    %cst_101 = arith.constant dense<0.000000e+00> : vector<8x128xf32>
    %305 = tpu.matmul %303, %194, %cst_101 {dimension_numbers = #tpu.dot_dimension_numbers<[1], [0], [0], [1], [0, 0, 1, 1], [], []>} : vector<8x32xf32>, vector<32x128xf32>, vector<8x128xf32> -> vector<8x128xf32>
    %306 = arith.addf %304, %305 : vector<8x128xf32>
    %307 = vector.extract_strided_slice %306 {offsets = [0, 0], sizes = [8, 96], strides = [1, 1]} : vector<8x128xf32> to vector<8x96xf32>
    %308 = arith.negf %307 : vector<8x96xf32>
    %309 = math.exp %308 : vector<8x96xf32>
    %cst_102 = arith.constant 1.000000e+00 : f32
    %310 = vector.broadcast %cst_102 : f32 to vector<8x96xf32>
    %311 = arith.addf %310, %309 : vector<8x96xf32>
    %312 = arith.divf %310, %311 : vector<8x96xf32>
    %313 = vector.extract_strided_slice %306 {offsets = [0, 96], sizes = [8, 32], strides = [1, 1]} : vector<8x128xf32> to vector<8x32xf32>
    %314 = math.tanh %313 : vector<8x32xf32>
    %315 = vector.extract_strided_slice %312 {offsets = [0, 32], sizes = [8, 32], strides = [1, 1]} : vector<8x96xf32> to vector<8x32xf32>
    %316 = arith.mulf %315, %300 : vector<8x32xf32>
    %317 = vector.extract_strided_slice %312 {offsets = [0, 0], sizes = [8, 32], strides = [1, 1]} : vector<8x96xf32> to vector<8x32xf32>
    %318 = arith.mulf %317, %314 : vector<8x32xf32>
    %319 = arith.addf %316, %318 : vector<8x32xf32>
    %320 = vector.extract_strided_slice %312 {offsets = [0, 64], sizes = [8, 32], strides = [1, 1]} : vector<8x96xf32> to vector<8x32xf32>
    %321 = math.tanh %319 : vector<8x32xf32>
    %322 = arith.mulf %320, %321 : vector<8x32xf32>
    %c0_103 = arith.constant 0 : index
    %c0_104 = arith.constant 0 : index
    %323 = vector.load %arg12[%c0_103, %c0_104] : memref<64x128xf32, #tpu.memory_space<vmem>>, vector<8x128xf32>
    %cst_105 = arith.constant dense<0.000000e+00> : vector<8x128xf32>
    %324 = tpu.matmul %322, %194, %cst_105 {dimension_numbers = #tpu.dot_dimension_numbers<[1], [0], [0], [1], [0, 0, 1, 1], [], []>} : vector<8x32xf32>, vector<32x128xf32>, vector<8x128xf32> -> vector<8x128xf32>
    %325 = arith.addf %323, %324 : vector<8x128xf32>
    %326 = vector.extract_strided_slice %325 {offsets = [0, 0], sizes = [8, 96], strides = [1, 1]} : vector<8x128xf32> to vector<8x96xf32>
    %327 = arith.negf %326 : vector<8x96xf32>
    %328 = math.exp %327 : vector<8x96xf32>
    %cst_106 = arith.constant 1.000000e+00 : f32
    %329 = vector.broadcast %cst_106 : f32 to vector<8x96xf32>
    %330 = arith.addf %329, %328 : vector<8x96xf32>
    %331 = arith.divf %329, %330 : vector<8x96xf32>
    %332 = vector.extract_strided_slice %325 {offsets = [0, 96], sizes = [8, 32], strides = [1, 1]} : vector<8x128xf32> to vector<8x32xf32>
    %333 = math.tanh %332 : vector<8x32xf32>
    %334 = vector.extract_strided_slice %331 {offsets = [0, 32], sizes = [8, 32], strides = [1, 1]} : vector<8x96xf32> to vector<8x32xf32>
    %335 = arith.mulf %334, %319 : vector<8x32xf32>
    %336 = vector.extract_strided_slice %331 {offsets = [0, 0], sizes = [8, 32], strides = [1, 1]} : vector<8x96xf32> to vector<8x32xf32>
    %337 = arith.mulf %336, %333 : vector<8x32xf32>
    %338 = arith.addf %335, %337 : vector<8x32xf32>
    %339 = vector.extract_strided_slice %331 {offsets = [0, 64], sizes = [8, 32], strides = [1, 1]} : vector<8x96xf32> to vector<8x32xf32>
    %340 = math.tanh %338 : vector<8x32xf32>
    %341 = arith.mulf %339, %340 : vector<8x32xf32>
    %c0_107 = arith.constant 0 : index
    %c0_108 = arith.constant 0 : index
    %342 = vector.load %arg7[%c0_107, %c0_108] : memref<32x8xf32, #tpu.memory_space<vmem>>, vector<32x8xf32>
    %cst_109 = arith.constant dense<0.000000e+00> : vector<8x8xf32>
    %343 = tpu.matmul %341, %342, %cst_109 {dimension_numbers = #tpu.dot_dimension_numbers<[1], [0], [0], [1], [0, 0, 1, 1], [], []>} : vector<8x32xf32>, vector<32x8xf32>, vector<8x8xf32> -> vector<8x8xf32>
    %c0_110 = arith.constant 0 : index
    %c0_111 = arith.constant 0 : index
    %344 = vector.load %arg8[%c0_110, %c0_111] : memref<1x8xf32, #tpu.memory_space<vmem>>, vector<1x8xf32>
    %345 = vector.broadcast %344 : vector<1x8xf32> to vector<8x8xf32>
    %346 = arith.addf %343, %345 : vector<8x8xf32>
    %cst_112 = arith.constant dense<0xFF800000> : vector<8xf32>
    %347 = vector.multi_reduction <maximumf>, %346, %cst_112 [1] : vector<8x8xf32> to vector<8xf32>
    %348 = vector.shape_cast %347 : vector<8xf32> to vector<8x1xf32>
    %349 = vector.broadcast %348 : vector<8x1xf32> to vector<8x8xf32>
    %350 = arith.subf %346, %349 : vector<8x8xf32>
    %351 = math.exp %350 : vector<8x8xf32>
    %cst_113 = arith.constant dense<0.000000e+00> : vector<8xf32>
    %352 = vector.multi_reduction <add>, %351, %cst_113 [1] : vector<8x8xf32> to vector<8xf32>
    %353 = vector.shape_cast %352 : vector<8xf32> to vector<8x1xf32>
    %354 = math.log %353 : vector<8x1xf32>
    %355 = vector.broadcast %354 : vector<8x1xf32> to vector<8x8xf32>
    %356 = arith.subf %350, %355 : vector<8x8xf32>
    %c0_114 = arith.constant 0 : index
    %c0_115 = arith.constant 0 : index
    %357 = vector.load %arg9[%c0_114, %c0_115] : memref<8x8xf32, #tpu.memory_space<vmem>>, vector<8x8xf32>
    tpu.vector_store %arg9[%c0_114, %c0_115], %356 {strides = array<i32>} : memref<8x8xf32, #tpu.memory_space<vmem>>, vector<8x8xf32>,
    return
  }
}

</mosaic_0001>

<llo_original>
// kernel: lstm_classifier_forward.1
$region0: #{lstm_classifier_forward.1}
  #allocation0 [shape = 'u32[]', space=smem, size = 0x4, offset = 0x4, fixed_abs, tag = 'smem constant byte address 0x4 - core index']
  #allocation1 [shape = 'u32[72,128]{1,0:T(1,128)}', space=vmem, size = 0x9000, scoped, tag = 'internal scratch']
  #allocation2 [shape = 'f32[64,256]{1,0:T(8,128)}', space=vmem, size = 0x10000, scoped, tag = 'scratch operand']
  #allocation3 [shape = 'f32[64,64]{1,0:T(8,128)}', space=vmem, size = 0x8000, scoped, tag = 'scratch operand']
  #allocation4 [shape = 'f32[64,128]{1,0:T(8,128)}', space=vmem, size = 0x8000, scoped, tag = 'scratch operand']
  %s0 = inlined_call_operand.vmem [shape: f32[64,64], index: 0, kind: input, shape index: {}]
  %s1 = inlined_call_operand.vmem [shape: f32[64,256], index: 1, kind: input, shape index: {}]
  %s2 = inlined_call_operand.vmem [shape: f32[1,256], index: 2, kind: input, shape index: {}]
  %s3 = inlined_call_operand.vmem [shape: f32[64,256], index: 3, kind: input, shape index: {}]
  %s4 = inlined_call_operand.vmem [shape: f32[64,128], index: 4, kind: input, shape index: {}]
  %s5 = inlined_call_operand.vmem [shape: f32[32,128], index: 5, kind: input, shape index: {}]
  %s6 = inlined_call_operand.vmem [shape: f32[1,128], index: 6, kind: input, shape index: {}]
  %s7 = inlined_call_operand.vmem [shape: f32[32,8], index: 7, kind: input, shape index: {}]
  %s8 = inlined_call_operand.vmem [shape: f32[1,8], index: 8, kind: input, shape index: {}]
  %s9 = inlined_call_operand.hbm [shape: f32[8,8], index: 9, kind: output, shape index: {}]
  %s10 = sld [smem:[#allocation0]]
  $region46: #{lstm_classifier_forward.1} parent=0
    _
  %s12 = ssub.s32 1, %s10
  %s13 = scalar_select 0, %s12, %s10
  $region1: #{lstm_classifier_forward.1} parent=0
    #allocation5 [shape = 'u8[4096]{0}', space=vmem, size = 0x1000, scoped, tag = 'output window, operand 0, single buffered']
    #allocation6 [shape = 's32[1]{0}', space=sflag, size = 0x4, scoped, tag = 'scoped memory for lstm_classifier_forward.1']
    %14 = vsyncpa [#allocation6], 0
    // Predicated region
    $region2: #{lstm_classifier_forward.1} parent=1 // pred_check
      _
    $region3: #{lstm_classifier_forward.1} parent=1 // pred_check_branch
      %16 = sbr.rel (0) target = $region5
    $region4: #{lstm_classifier_forward.1} parent=1 // pred_region
      _
    $region5: #{lstm_classifier_forward.1} parent=1 // pred_fallthru
      _
    // Predicated region
    $region6: #{lstm_classifier_forward.1} parent=1 // pred_check
      _
    $region7: #{lstm_classifier_forward.1} parent=1 // pred_check_branch
      %18 = sbr.rel (0) target = $region9
    $region8: #{lstm_classifier_forward.1} parent=1 // pred_region
      _
    $region9: #{lstm_classifier_forward.1} parent=1 // pred_fallthru
      _
    // Predicated region
    $region10: #{lstm_classifier_forward.1} parent=1 // pred_check
      _
    $region11: #{lstm_classifier_forward.1} parent=1 // pred_check_branch
      %20 = sbr.rel (0) target = $region13
    $region12: #{lstm_classifier_forward.1} parent=1 // pred_region
      _
    $region13: #{lstm_classifier_forward.1} parent=1 // pred_fallthru
      _
    // Predicated region
    $region14: #{lstm_classifier_forward.1} parent=1 // pred_check
      _
    $region15: #{lstm_classifier_forward.1} parent=1 // pred_check_branch
      %22 = sbr.rel (0) target = $region17
    $region16: #{lstm_classifier_forward.1} parent=1 // pred_region
      _
    $region17: #{lstm_classifier_forward.1} parent=1 // pred_fallthru
      _
    // Predicated region
    $region18: #{lstm_classifier_forward.1} parent=1 // pred_check
      _
    $region19: #{lstm_classifier_forward.1} parent=1 // pred_check_branch
      %24 = sbr.rel (0) target = $region21
    $region20: #{lstm_classifier_forward.1} parent=1 // pred_region
      _
    $region21: #{lstm_classifier_forward.1} parent=1 // pred_fallthru
      _
    // Predicated region
    $region22: #{lstm_classifier_forward.1} parent=1 // pred_check
      _
    $region23: #{lstm_classifier_forward.1} parent=1 // pred_check_branch
      %26 = sbr.rel (0) target = $region25
    $region24: #{lstm_classifier_forward.1} parent=1 // pred_region
      _
    $region25: #{lstm_classifier_forward.1} parent=1 // pred_fallthru
      _
    // Predicated region
    $region26: #{lstm_classifier_forward.1} parent=1 // pred_check
      _
    $region27: #{lstm_classifier_forward.1} parent=1 // pred_check_branch
      %28 = sbr.rel (0) target = $region29
    $region28: #{lstm_classifier_forward.1} parent=1 // pred_region
      _
    $region29: #{lstm_classifier_forward.1} parent=1 // pred_fallthru
      _
    // Predicated region
    $region30: #{lstm_classifier_forward.1} parent=1 // pred_check
      _
    $region31: #{lstm_classifier_forward.1} parent=1 // pred_check_branch
      %30 = sbr.rel (0) target = $region33
    $region32: #{lstm_classifier_forward.1} parent=1 // pred_region
      _
    $region33: #{lstm_classifier_forward.1} parent=1 // pred_fallthru
      _
    // Predicated region
    $region34: #{lstm_classifier_forward.1} parent=1 // pred_check
      _
    $region35: #{lstm_classifier_forward.1} parent=1 // pred_check_branch
      %32 = sbr.rel (0) target = $region37
    $region36: #{lstm_classifier_forward.1} parent=1 // pred_region
      _
    $region37: #{lstm_classifier_forward.1} parent=1 // pred_fallthru
      _
    %v33 = vld [vmem:[%s0] sm:$0xff]
    %v34 = vld [vmem:[%s0 + $0x8] sm:$0xff]
    %v35 = vld [vmem:[%s0 + $0x10] sm:$0xff]
    %v36 = vld [vmem:[%s0 + $0x18] sm:$0xff]
    %v37 = vld [vmem:[%s0 + $0x20] sm:$0xff]
    %v38 = vld [vmem:[%s0 + $0x28] sm:$0xff]
    %v39 = vld [vmem:[%s0 + $0x30] sm:$0xff]
    %v40 = vld [vmem:[%s0 + $0x38] sm:$0xff]
    %v41 = vld [vmem:[%s1] sm:$0xff]
    %v42 = vld [vmem:[%s1 + $0x8] sm:$0xff]
    %v43 = vld [vmem:[%s1 + $0x10] sm:$0xff]
    %v44 = vld [vmem:[%s1 + $0x18] sm:$0xff]
    %v45 = vld [vmem:[%s1 + $0x20] sm:$0xff]
    %v46 = vld [vmem:[%s1 + $0x28] sm:$0xff]
    %v47 = vld [vmem:[%s1 + $0x30] sm:$0xff]
    %v48 = vld [vmem:[%s1 + $0x38] sm:$0xff]
    %v49 = vld [vmem:[%s1 + $0x40] sm:$0xff]
    %v50 = vld [vmem:[%s1 + $0x48] sm:$0xff]
    %v51 = vld [vmem:[%s1 + $0x50] sm:$0xff]
    %v52 = vld [vmem:[%s1 + $0x58] sm:$0xff]
    %v53 = vld [vmem:[%s1 + $0x60] sm:$0xff]
    %v54 = vld [vmem:[%s1 + $0x68] sm:$0xff]
    %v55 = vld [vmem:[%s1 + $0x70] sm:$0xff]
    %v56 = vld [vmem:[%s1 + $0x78] sm:$0xff]
    %v57 = vld [vmem:[%s2] sm:$0x3]
    %v59 = vperm.slane %v57, 0
    %v60 = vperm.slane %v57, 1
    %vm63 = vcmask 523264
    %v65 = vsel %vm63, %v33, 0
    %v68 = vsel %vm63, %v34, 0
    %v71 = vsel %vm63, %v35, 0
    %v74 = vsel %vm63, %v36, 0
    %v77 = vsel %vm63, %v37, 0
    %v80 = vsel %vm63, %v38, 0
    %v83 = vsel %vm63, %v39, 0
    %v86 = vsel %vm63, %v40, 0
    %88 = vmatpush.msra.mxu0 0.0
    %89 = vmatpush.msra.mxu0 0.0
    %90 = vmatpush.msra.mxu0 0.0
    %91 = vmatpush.msra.mxu0 0.0
    %92 = vmatpush.msra.mxu0 0.0
    %93 = vmatpush.msra.mxu0 0.0
    %94 = vmatpush.msra.mxu0 0.0
    %95 = vmatpush.msra.mxu0 0.0
    %96 = vmatpush.msra.mxu0 %v55
    %97 = vmatpush.msra.mxu0 %v53
    %98 = vmatpush.msra.mxu0 %v51
    %99 = vmatpush.msra.mxu0 %v49
    %100 = vmatpush.msra.mxu0 %v47
    %101 = vmatpush.msra.mxu0 %v45
    %102 = vmatpush.msra.mxu0 %v43
    %103 = vmatpush.msra.mxu0 %v41
    %104 = vmatmul.f32.gmra.mxu0 %v65
    %v105 = vpop.f32.mrf.mxu0
    %v106 = vadd.f32 %v59, %v105
    %107 = vmatmul.f32.gmra.mxu0 %v68
    %v108 = vpop.f32.mrf.mxu0
    %v109 = vadd.f32 %v59, %v108
    %110 = vmatmul.f32.gmra.mxu0 %v71
    %v111 = vpop.f32.mrf.mxu0
    %v112 = vadd.f32 %v59, %v111
    %113 = vmatmul.f32.gmra.mxu0 %v74
    %v114 = vpop.f32.mrf.mxu0
    %v115 = vadd.f32 %v59, %v114
    %116 = vmatmul.f32.gmra.mxu0 %v77
    %v117 = vpop.f32.mrf.mxu0
    %v118 = vadd.f32 %v59, %v117
    %119 = vmatmul.f32.gmra.mxu0 %v80
    %v120 = vpop.f32.mrf.mxu0
    %v121 = vadd.f32 %v59, %v120
    %122 = vmatmul.f32.gmra.mxu0 %v83
    %v123 = vpop.f32.mrf.mxu0
    %v124 = vadd.f32 %v59, %v123
    %125 = vmatmul.f32.gmra.mxu0 %v86
    %v126 = vpop.f32.mrf.mxu0
    %v127 = vadd.f32 %v59, %v126
    %128 = vdwg.mxu0
    %129 = vmatpush.msra.mxu0 0.0
    %130 = vmatpush.msra.mxu0 0.0
    %131 = vmatpush.msra.mxu0 0.0
    %132 = vmatpush.msra.mxu0 0.0
    %133 = vmatpush.msra.mxu0 0.0
    %134 = vmatpush.msra.mxu0 0.0
    %135 = vmatpush.msra.mxu0 0.0
    %136 = vmatpush.msra.mxu0 0.0
    %137 = vmatpush.msra.mxu0 %v56
    %138 = vmatpush.msra.mxu0 %v54
    %139 = vmatpush.msra.mxu0 %v52
    %140 = vmatpush.msra.mxu0 %v50
    %141 = vmatpush.msra.mxu0 %v48
    %142 = vmatpush.msra.mxu0 %v46
    %143 = vmatpush.msra.mxu0 %v44
    %144 = vmatpush.msra.mxu0 %v42
    %145 = vmatmul.f32.gmra.mxu0 %v65
    %v146 = vpop.f32.mrf.mxu0
    %v147 = vadd.f32 %v60, %v146
    %148 = vmatmul.f32.gmra.mxu0 %v68
    %v149 = vpop.f32.mrf.mxu0
    %v150 = vadd.f32 %v60, %v149
    %151 = vmatmul.f32.gmra.mxu0 %v71
    %v152 = vpop.f32.mrf.mxu0
    %v153 = vadd.f32 %v60, %v152
    %154 = vmatmul.f32.gmra.mxu0 %v74
    %v155 = vpop.f32.mrf.mxu0
    %v156 = vadd.f32 %v60, %v155
    %157 = vmatmul.f32.gmra.mxu0 %v77
    %v158 = vpop.f32.mrf.mxu0
    %v159 = vadd.f32 %v60, %v158
    %160 = vmatmul.f32.gmra.mxu0 %v80
    %v161 = vpop.f32.mrf.mxu0
    %v162 = vadd.f32 %v60, %v161
    %163 = vmatmul.f32.gmra.mxu0 %v83
    %v164 = vpop.f32.mrf.mxu0
    %v165 = vadd.f32 %v60, %v164
    %166 = vmatmul.f32.gmra.mxu0 %v86
    %v167 = vpop.f32.mrf.mxu0
    %v168 = vadd.f32 %v60, %v167
    %169 = vdwg.mxu0
    %170 = vst [vmem:[#allocation2] sm:$0xff] %v106
    %171 = vst [vmem:[#allocation2 + $0x8] sm:$0xff] %v147
    %172 = vst [vmem:[#allocation2 + $0x10] sm:$0xff] %v109
    %173 = vst [vmem:[#allocation2 + $0x18] sm:$0xff] %v150
    %174 = vst [vmem:[#allocation2 + $0x20] sm:$0xff] %v112
    %175 = vst [vmem:[#allocation2 + $0x28] sm:$0xff] %v153
    %176 = vst [vmem:[#allocation2 + $0x30] sm:$0xff] %v115
    %177 = vst [vmem:[#allocation2 + $0x38] sm:$0xff] %v156
    %178 = vst [vmem:[#allocation2 + $0x40] sm:$0xff] %v118
    %179 = vst [vmem:[#allocation2 + $0x48] sm:$0xff] %v159
    %180 = vst [vmem:[#allocation2 + $0x50] sm:$0xff] %v121
    %181 = vst [vmem:[#allocation2 + $0x58] sm:$0xff] %v162
    %182 = vst [vmem:[#allocation2 + $0x60] sm:$0xff] %v124
    %183 = vst [vmem:[#allocation2 + $0x68] sm:$0xff] %v165
    %184 = vst [vmem:[#allocation2 + $0x70] sm:$0xff] %v127
    %185 = vst [vmem:[#allocation2 + $0x78] sm:$0xff] %v168
    %v186 = vld [vmem:[%s3] sm:$0xff]
    %v187 = vld [vmem:[%s3 + $0x8] sm:$0xff]
    %v188 = vld [vmem:[%s3 + $0x10] sm:$0xff]
    %v189 = vld [vmem:[%s3 + $0x18] sm:$0xff]
    %v190 = vld [vmem:[%s3 + $0x20] sm:$0xff]
    %v191 = vld [vmem:[%s3 + $0x28] sm:$0xff]
    %v192 = vld [vmem:[%s3 + $0x30] sm:$0xff]
    %v193 = vld [vmem:[%s3 + $0x38] sm:$0xff]
    %v194 = vld [vmem:[%s3 + $0x40] sm:$0xff]
    %v195 = vld [vmem:[%s3 + $0x48] sm:$0xff]
    %v196 = vld [vmem:[%s3 + $0x50] sm:$0xff]
    %v197 = vld [vmem:[%s3 + $0x58] sm:$0xff]
    %v198 = vld [vmem:[%s3 + $0x60] sm:$0xff]
    %v199 = vld [vmem:[%s3 + $0x68] sm:$0xff]
    %v200 = vld [vmem:[%s3 + $0x70] sm:$0xff]
    %v201 = vld [vmem:[%s3 + $0x78] sm:$0xff]
    %v202 = vld [vmem:[#allocation2] sm:$0xff]
    %v203 = vld [vmem:[#allocation2 + $0x8] sm:$0xff]
    %v204 = vxor.u32 %v202, 2147483648
    %v205 = vxor.u32 %v203, 2147483648
    %v206 = vmul.f32 %v204, 1.442695
    %v207 = vpow.pop %v206
    %v208 = vmul.f32 %v205, 1.442695
    %v209 = vpow.pop %v208
    %v210 = vadd.f32 %v207, 1.0
    %v211 = vadd.f32 %v209, 1.0
    %v212 = vrcp.pop %v210
    %v213 = vmul.f32 %v210, %v212
    %v214 = vsub.f32 1.0, %v213
    %v215 = vmul.f32 %v212, %v214
    %v216 = vadd.f32 %v212, %v215
    %vm217 = vweird.f32 %v210
    %vm218 = vweird.f32 %v212
    %vm219 = vmor %vm217, %vm218
    %v220 = vsel %vm219, %v212, %v216
    %v221 = vand.u32 2147483647, %v210
    %vm222 = vcmp.eq.f32.partialorder %v221, 8.507059e+37
    %v223 = vand.u32 %v210, 2147483648
    %v224 = vor.u32 1.1754944e-38, %v223
    %v225 = vsel %vm222, %v224, %v220
    %v226 = vmul.f32 1.0, %v225
    %v227 = vrcp.pop %v211
    %v228 = vmul.f32 %v211, %v227
    %v229 = vsub.f32 1.0, %v228
    %v230 = vmul.f32 %v227, %v229
    %v231 = vadd.f32 %v227, %v230
    %vm232 = vweird.f32 %v211
    %vm233 = vweird.f32 %v227
    %vm234 = vmor %vm232, %vm233
    %v235 = vsel %vm234, %v227, %v231
    %v236 = vand.u32 2147483647, %v211
    %vm237 = vcmp.eq.f32.partialorder %v236, 8.507059e+37
    %v238 = vand.u32 %v211, 2147483648
    %v239 = vor.u32 1.1754944e-38, %v238
    %v240 = vsel %vm237, %v239, %v235
    %v241 = vmul.f32 1.0, %v240
    %v242 = vtanh.pop %v203
    %244 = vrot.lane.b32.xlu0 %v242, 64
    %v245 = vpop.permute.xlu0 %244
    %v247 = vmul.f32 %v226, %v245
    %v248 = vtanh.pop %v247
    %v249 = vmul.f32 %v241, %v248
    %vm250 = vcmask 261120
    %251 = vst.msk [vmem:[#allocation3] sm:$0xff] %vm250, %v249
    %vm252 = vcmask 523520
    %253 = vst.msk [vmem:[#allocation3 + $0x38] sm:$0xff] %vm252, %v249
    %v254 = vld [vmem:[#allocation2 + $0x10] sm:$0xff]
    %v255 = vld [vmem:[#allocation2 + $0x18] sm:$0xff]
    %v257 = vsel %vm63, %v249, 0
    %259 = vmatpush.msra.mxu0 0.0
    %260 = vmatpush.msra.mxu0 0.0
    %261 = vmatpush.msra.mxu0 0.0
    %262 = vmatpush.msra.mxu0 0.0
    %263 = vmatpush.msra.mxu0 0.0
    %264 = vmatpush.msra.mxu0 0.0
    %265 = vmatpush.msra.mxu0 0.0
    %266 = vmatpush.msra.mxu0 0.0
    %267 = vmatpush.msra.mxu0 %v200
    %268 = vmatpush.msra.mxu0 %v198
    %269 = vmatpush.msra.mxu0 %v196
    %270 = vmatpush.msra.mxu0 %v194
    %271 = vmatpush.msra.mxu0 %v192
    %272 = vmatpush.msra.mxu0 %v190
    %273 = vmatpush.msra.mxu0 %v188
    %274 = vmatpush.msra.mxu0 %v186
    %275 = vmatmul.f32.gmra.mxu0 %v257
    %v276 = vpop.f32.mrf.mxu0
    %v277 = vadd.f32 0.0, %v276
    %278 = vdwg.mxu0
    %279 = vmatpush.msra.mxu0 0.0
    %280 = vmatpush.msra.mxu0 0.0
    %281 = vmatpush.msra.mxu0 0.0
    %282 = vmatpush.msra.mxu0 0.0
    %283 = vmatpush.msra.mxu0 0.0
    %284 = vmatpush.msra.mxu0 0.0
    %285 = vmatpush.msra.mxu0 0.0
    %286 = vmatpush.msra.mxu0 0.0
    %287 = vmatpush.msra.mxu0 %v201
    %288 = vmatpush.msra.mxu0 %v199
    %289 = vmatpush.msra.mxu0 %v197
    %290 = vmatpush.msra.mxu0 %v195
    %291 = vmatpush.msra.mxu0 %v193
    %292 = vmatpush.msra.mxu0 %v191
    %293 = vmatpush.msra.mxu0 %v189
    %294 = vmatpush.msra.mxu0 %v187
    %295 = vmatmul.f32.gmra.mxu0 %v257
    %v296 = vpop.f32.mrf.mxu0
    %v297 = vadd.f32 0.0, %v296
    %298 = vdwg.mxu0
    %v299 = vadd.f32 %v254, %v277
    %v300 = vadd.f32 %v255, %v297
    %v301 = vxor.u32 %v299, 2147483648
    %v302 = vxor.u32 %v300, 2147483648
    %v303 = vmul.f32 %v301, 1.442695
    %v304 = vpow.pop %v303
    %v305 = vmul.f32 %v302, 1.442695
    %v306 = vpow.pop %v305
    %v307 = vadd.f32 %v304, 1.0
    %v308 = vadd.f32 %v306, 1.0
    %v309 = vrcp.pop %v307
    %v310 = vmul.f32 %v307, %v309
    %v311 = vsub.f32 1.0, %v310
    %v312 = vmul.f32 %v309, %v311
    %v313 = vadd.f32 %v309, %v312
    %vm314 = vweird.f32 %v307
    %vm315 = vweird.f32 %v309
    %vm316 = vmor %vm314, %vm315
    %v317 = vsel %vm316, %v309, %v313
    %v318 = vand.u32 2147483647, %v307
    %vm319 = vcmp.eq.f32.partialorder %v318, 8.507059e+37
    %v320 = vand.u32 %v307, 2147483648
    %v321 = vor.u32 1.1754944e-38, %v320
    %v322 = vsel %vm319, %v321, %v317
    %v323 = vmul.f32 1.0, %v322
    %v324 = vrcp.pop %v308
    %v325 = vmul.f32 %v308, %v324
    %v326 = vsub.f32 1.0, %v325
    %v327 = vmul.f32 %v324, %v326
    %v328 = vadd.f32 %v324, %v327
    %vm329 = vweird.f32 %v308
    %vm330 = vweird.f32 %v324
    %vm331 = vmor %vm329, %vm330
    %v332 = vsel %vm331, %v324, %v328
    %v333 = vand.u32 2147483647, %v308
    %vm334 = vcmp.eq.f32.partialorder %v333, 8.507059e+37
    %v335 = vand.u32 %v308, 2147483648
    %v336 = vor.u32 1.1754944e-38, %v335
    %v337 = vsel %vm334, %v336, %v332
    %v338 = vmul.f32 1.0, %v337
    %v339 = vtanh.pop %v300
    %341 = vrot.lane.b32.xlu0 %v247, 64
    %v342 = vpop.permute.xlu0 %341
    %v344 = vmul.f32 %v323, %v342
    %346 = vrot.lane.b32.xlu0 %v339, 64
    %v347 = vpop.permute.xlu0 %346
    %v349 = vmul.f32 %v323, %v347
    %351 = vrot.lane.b32.xlu0 %v349, 64
    %v352 = vpop.permute.xlu0 %351
    %v354 = vadd.f32 %v344, %v352
    %v355 = vtanh.pop %v354
    %357 = vrot.lane.b32.xlu0 %v355, 64
    %v358 = vpop.permute.xlu0 %357
    %v360 = vmul.f32 %v338, %v358
    %361 = vst.msk [vmem:[#allocation3 + $0x8] sm:$0xff] %vm250, %v360
    %362 = vst.msk [vmem:[#allocation3 + $0x30] sm:$0xff] %vm252, %v360
    %v363 = vld [vmem:[#allocation2 + $0x20] sm:$0xff]
    %v364 = vld [vmem:[#allocation2 + $0x28] sm:$0xff]
    %v366 = vsel %vm63, %v360, 0
    %368 = vmatpush.msra.mxu0 0.0
    %369 = vmatpush.msra.mxu0 0.0
    %370 = vmatpush.msra.mxu0 0.0
    %371 = vmatpush.msra.mxu0 0.0
    %372 = vmatpush.msra.mxu0 0.0
    %373 = vmatpush.msra.mxu0 0.0
    %374 = vmatpush.msra.mxu0 0.0
    %375 = vmatpush.msra.mxu0 0.0
    %376 = vmatpush.msra.mxu0 %v200
    %377 = vmatpush.msra.mxu0 %v198
    %378 = vmatpush.msra.mxu0 %v196
    %379 = vmatpush.msra.mxu0 %v194
    %380 = vmatpush.msra.mxu0 %v192
    %381 = vmatpush.msra.mxu0 %v190
    %382 = vmatpush.msra.mxu0 %v188
    %383 = vmatpush.msra.mxu0 %v186
    %384 = vmatmul.f32.gmra.mxu0 %v366
    %v385 = vpop.f32.mrf.mxu0
    %v386 = vadd.f32 0.0, %v385
    %387 = vdwg.mxu0
    %388 = vmatpush.msra.mxu0 0.0
    %389 = vmatpush.msra.mxu0 0.0
    %390 = vmatpush.msra.mxu0 0.0
    %391 = vmatpush.msra.mxu0 0.0
    %392 = vmatpush.msra.mxu0 0.0
    %393 = vmatpush.msra.mxu0 0.0
    %394 = vmatpush.msra.mxu0 0.0
    %395 = vmatpush.msra.mxu0 0.0
    %396 = vmatpush.msra.mxu0 %v201
    %397 = vmatpush.msra.mxu0 %v199
    %398 = vmatpush.msra.mxu0 %v197
    %399 = vmatpush.msra.mxu0 %v195
    %400 = vmatpush.msra.mxu0 %v193
    %401 = vmatpush.msra.mxu0 %v191
    %402 = vmatpush.msra.mxu0 %v189
    %403 = vmatpush.msra.mxu0 %v187
    %404 = vmatmul.f32.gmra.mxu0 %v366
    %v405 = vpop.f32.mrf.mxu0
    %v406 = vadd.f32 0.0, %v405
    %407 = vdwg.mxu0
    %v408 = vadd.f32 %v363, %v386
    %v409 = vadd.f32 %v364, %v406
    %v410 = vxor.u32 %v408, 2147483648
    %v411 = vxor.u32 %v409, 2147483648
    %v412 = vmul.f32 %v410, 1.442695
    %v413 = vpow.pop %v412
    %v414 = vmul.f32 %v411, 1.442695
    %v415 = vpow.pop %v414
    %v416 = vadd.f32 %v413, 1.0
    %v417 = vadd.f32 %v415, 1.0
    %v418 = vrcp.pop %v416
    %v419 = vmul.f32 %v416, %v418
    %v420 = vsub.f32 1.0, %v419
    %v421 = vmul.f32 %v418, %v420
    %v422 = vadd.f32 %v418, %v421
    %vm423 = vweird.f32 %v416
    %vm424 = vweird.f32 %v418
    %vm425 = vmor %vm423, %vm424
    %v426 = vsel %vm425, %v418, %v422
    %v427 = vand.u32 2147483647, %v416
    %vm428 = vcmp.eq.f32.partialorder %v427, 8.507059e+37
    %v429 = vand.u32 %v416, 2147483648
    %v430 = vor.u32 1.1754944e-38, %v429
    %v431 = vsel %vm428, %v430, %v426
    %v432 = vmul.f32 1.0, %v431
    %v433 = vrcp.pop %v417
    %v434 = vmul.f32 %v417, %v433
    %v435 = vsub.f32 1.0, %v434
    %v436 = vmul.f32 %v433, %v435
    %v437 = vadd.f32 %v433, %v436
    %vm438 = vweird.f32 %v417
    %vm439 = vweird.f32 %v433
    %vm440 = vmor %vm438, %vm439
    %v441 = vsel %vm440, %v433, %v437
    %v442 = vand.u32 2147483647, %v417
    %vm443 = vcmp.eq.f32.partialorder %v442, 8.507059e+37
    %v444 = vand.u32 %v417, 2147483648
    %v445 = vor.u32 1.1754944e-38, %v444
    %v446 = vsel %vm443, %v445, %v441
    %v447 = vmul.f32 1.0, %v446
    %v448 = vtanh.pop %v409
    %v449 = vmul.f32 %v432, %v354
    %451 = vrot.lane.b32.xlu0 %v448, 64
    %v452 = vpop.permute.xlu0 %451
    %v454 = vmul.f32 %v432, %v452
    %456 = vrot.lane.b32.xlu0 %v454, 64
    %v457 = vpop.permute.xlu0 %456
    %v459 = vadd.f32 %v449, %v457
    %v460 = vtanh.pop %v459
    %462 = vrot.lane.b32.xlu0 %v460, 64
    %v463 = vpop.permute.xlu0 %462
    %v465 = vmul.f32 %v447, %v463
    %466 = vst.msk [vmem:[#allocation3 + $0x10] sm:$0xff] %vm250, %v465
    %467 = vst.msk [vmem:[#allocation3 + $0x28] sm:$0xff] %vm252, %v465
    %v468 = vld [vmem:[#allocation2 + $0x30] sm:$0xff]
    %v469 = vld [vmem:[#allocation2 + $0x38] sm:$0xff]
    %v471 = vsel %vm63, %v465, 0
    %473 = vmatpush.msra.mxu0 0.0
    %474 = vmatpush.msra.mxu0 0.0
    %475 = vmatpush.msra.mxu0 0.0
    %476 = vmatpush.msra.mxu0 0.0
    %477 = vmatpush.msra.mxu0 0.0
    %478 = vmatpush.msra.mxu0 0.0
    %479 = vmatpush.msra.mxu0 0.0
    %480 = vmatpush.msra.mxu0 0.0
    %481 = vmatpush.msra.mxu0 %v200
    %482 = vmatpush.msra.mxu0 %v198
    %483 = vmatpush.msra.mxu0 %v196
    %484 = vmatpush.msra.mxu0 %v194
    %485 = vmatpush.msra.mxu0 %v192
    %486 = vmatpush.msra.mxu0 %v190
    %487 = vmatpush.msra.mxu0 %v188
    %488 = vmatpush.msra.mxu0 %v186
    %489 = vmatmul.f32.gmra.mxu0 %v471
    %v490 = vpop.f32.mrf.mxu0
    %v491 = vadd.f32 0.0, %v490
    %492 = vdwg.mxu0
    %493 = vmatpush.msra.mxu0 0.0
    %494 = vmatpush.msra.mxu0 0.0
    %495 = vmatpush.msra.mxu0 0.0
    %496 = vmatpush.msra.mxu0 0.0
    %497 = vmatpush.msra.mxu0 0.0
    %498 = vmatpush.msra.mxu0 0.0
    %499 = vmatpush.msra.mxu0 0.0
    %500 = vmatpush.msra.mxu0 0.0
    %501 = vmatpush.msra.mxu0 %v201
    %502 = vmatpush.msra.mxu0 %v199
    %503 = vmatpush.msra.mxu0 %v197
    %504 = vmatpush.msra.mxu0 %v195
    %505 = vmatpush.msra.mxu0 %v193
    %506 = vmatpush.msra.mxu0 %v191
    %507 = vmatpush.msra.mxu0 %v189
    %508 = vmatpush.msra.mxu0 %v187
    %509 = vmatmul.f32.gmra.mxu0 %v471
    %v510 = vpop.f32.mrf.mxu0
    %v511 = vadd.f32 0.0, %v510
    %512 = vdwg.mxu0
    %v513 = vadd.f32 %v468, %v491
    %v514 = vadd.f32 %v469, %v511
    %v515 = vxor.u32 %v513, 2147483648
    %v516 = vxor.u32 %v514, 2147483648
    %v517 = vmul.f32 %v515, 1.442695
    %v518 = vpow.pop %v517
    %v519 = vmul.f32 %v516, 1.442695
    %v520 = vpow.pop %v519
    %v521 = vadd.f32 %v518, 1.0
    %v522 = vadd.f32 %v520, 1.0
    %v523 = vrcp.pop %v521
    %v524 = vmul.f32 %v521, %v523
    %v525 = vsub.f32 1.0, %v524
    %v526 = vmul.f32 %v523, %v525
    %v527 = vadd.f32 %v523, %v526
    %vm528 = vweird.f32 %v521
    %vm529 = vweird.f32 %v523
    %vm530 = vmor %vm528, %vm529
    %v531 = vsel %vm530, %v523, %v527
    %v532 = vand.u32 2147483647, %v521
    %vm533 = vcmp.eq.f32.partialorder %v532, 8.507059e+37
    %v534 = vand.u32 %v521, 2147483648
    %v535 = vor.u32 1.1754944e-38, %v534
    %v536 = vsel %vm533, %v535, %v531
    %v537 = vmul.f32 1.0, %v536
    %v538 = vrcp.pop %v522
    %v539 = vmul.f32 %v522, %v538
    %v540 = vsub.f32 1.0, %v539
    %v541 = vmul.f32 %v538, %v540
    %v542 = vadd.f32 %v538, %v541
    %vm543 = vweird.f32 %v522
    %vm544 = vweird.f32 %v538
    %vm545 = vmor %vm543, %vm544
    %v546 = vsel %vm545, %v538, %v542
    %v547 = vand.u32 2147483647, %v522
    %vm548 = vcmp.eq.f32.partialorder %v547, 8.507059e+37
    %v549 = vand.u32 %v522, 2147483648
    %v550 = vor.u32 1.1754944e-38, %v549
    %v551 = vsel %vm548, %v550, %v546
    %v552 = vmul.f32 1.0, %v551
    %v553 = vtanh.pop %v514
    %v554 = vmul.f32 %v537, %v459
    %556 = vrot.lane.b32.xlu0 %v553, 64
    %v557 = vpop.permute.xlu0 %556
    %v559 = vmul.f32 %v537, %v557
    %561 = vrot.lane.b32.xlu0 %v559, 64
    %v562 = vpop.permute.xlu0 %561
    %v564 = vadd.f32 %v554, %v562
    %v565 = vtanh.pop %v564
    %567 = vrot.lane.b32.xlu0 %v565, 64
    %v568 = vpop.permute.xlu0 %567
    %v570 = vmul.f32 %v552, %v568
    %571 = vst.msk [vmem:[#allocation3 + $0x18] sm:$0xff] %vm250, %v570
    %572 = vst.msk [vmem:[#allocation3 + $0x20] sm:$0xff] %vm252, %v570
    %v573 = vld [vmem:[#allocation2 + $0x40] sm:$0xff]
    %v574 = vld [vmem:[#allocation2 + $0x48] sm:$0xff]
    %v576 = vsel %vm63, %v570, 0
    %578 = vmatpush.msra.mxu0 0.0
    %579 = vmatpush.msra.mxu0 0.0
    %580 = vmatpush.msra.mxu0 0.0
    %581 = vmatpush.msra.mxu0 0.0
    %582 = vmatpush.msra.mxu0 0.0
    %583 = vmatpush.msra.mxu0 0.0
    %584 = vmatpush.msra.mxu0 0.0
    %585 = vmatpush.msra.mxu0 0.0
    %586 = vmatpush.msra.mxu0 %v200
    %587 = vmatpush.msra.mxu0 %v198
    %588 = vmatpush.msra.mxu0 %v196
    %589 = vmatpush.msra.mxu0 %v194
    %590 = vmatpush.msra.mxu0 %v192
    %591 = vmatpush.msra.mxu0 %v190
    %592 = vmatpush.msra.mxu0 %v188
    %593 = vmatpush.msra.mxu0 %v186
    %594 = vmatmul.f32.gmra.mxu0 %v576
    %v595 = vpop.f32.mrf.mxu0
    %v596 = vadd.f32 0.0, %v595
    %597 = vdwg.mxu0
    %598 = vmatpush.msra.mxu0 0.0
    %599 = vmatpush.msra.mxu0 0.0
    %600 = vmatpush.msra.mxu0 0.0
    %601 = vmatpush.msra.mxu0 0.0
    %602 = vmatpush.msra.mxu0 0.0
    %603 = vmatpush.msra.mxu0 0.0
    %604 = vmatpush.msra.mxu0 0.0
    %605 = vmatpush.msra.mxu0 0.0
    %606 = vmatpush.msra.mxu0 %v201
    %607 = vmatpush.msra.mxu0 %v199
    %608 = vmatpush.msra.mxu0 %v197
    %609 = vmatpush.msra.mxu0 %v195
    %610 = vmatpush.msra.mxu0 %v193
    %611 = vmatpush.msra.mxu0 %v191
    %612 = vmatpush.msra.mxu0 %v189
    %613 = vmatpush.msra.mxu0 %v187
    %614 = vmatmul.f32.gmra.mxu0 %v576
    %v615 = vpop.f32.mrf.mxu0
    %v616 = vadd.f32 0.0, %v615
    %617 = vdwg.mxu0
    %v618 = vadd.f32 %v573, %v596
    %v619 = vadd.f32 %v574, %v616
    %v620 = vxor.u32 %v618, 2147483648
    %v621 = vxor.u32 %v619, 2147483648
    %v622 = vmul.f32 %v620, 1.442695
    %v623 = vpow.pop %v622
    %v624 = vmul.f32 %v621, 1.442695
    %v625 = vpow.pop %v624
    %v626 = vadd.f32 %v623, 1.0
    %v627 = vadd.f32 %v625, 1.0
    %v628 = vrcp.pop %v626
    %v629 = vmul.f32 %v626, %v628
    %v630 = vsub.f32 1.0, %v629
    %v631 = vmul.f32 %v628, %v630
    %v632 = vadd.f32 %v628, %v631
    %vm633 = vweird.f32 %v626
    %vm634 = vweird.f32 %v628
    %vm635 = vmor %vm633, %vm634
    %v636 = vsel %vm635, %v628, %v632
    %v637 = vand.u32 2147483647, %v626
    %vm638 = vcmp.eq.f32.partialorder %v637, 8.507059e+37
    %v639 = vand.u32 %v626, 2147483648
    %v640 = vor.u32 1.1754944e-38, %v639
    %v641 = vsel %vm638, %v640, %v636
    %v642 = vmul.f32 1.0, %v641
    %v643 = vrcp.pop %v627
    %v644 = vmul.f32 %v627, %v643
    %v645 = vsub.f32 1.0, %v644
    %v646 = vmul.f32 %v643, %v645
    %v647 = vadd.f32 %v643, %v646
    %vm648 = vweird.f32 %v627
    %vm649 = vweird.f32 %v643
    %vm650 = vmor %vm648, %vm649
    %v651 = vsel %vm650, %v643, %v647
    %v652 = vand.u32 2147483647, %v627
    %vm653 = vcmp.eq.f32.partialorder %v652, 8.507059e+37
    %v654 = vand.u32 %v627, 2147483648
    %v655 = vor.u32 1.1754944e-38, %v654
    %v656 = vsel %vm653, %v655, %v651
    %v657 = vmul.f32 1.0, %v656
    %v658 = vtanh.pop %v619
    %v659 = vmul.f32 %v642, %v564
    %661 = vrot.lane.b32.xlu0 %v658, 64
    %v662 = vpop.permute.xlu0 %661
    %v664 = vmul.f32 %v642, %v662
    %666 = vrot.lane.b32.xlu0 %v664, 64
    %v667 = vpop.permute.xlu0 %666
    %v669 = vadd.f32 %v659, %v667
    %v670 = vtanh.pop %v669
    %672 = vrot.lane.b32.xlu0 %v670, 64
    %v673 = vpop.permute.xlu0 %672
    %v675 = vmul.f32 %v657, %v673
    %676 = vst.msk [vmem:[#allocation3 + $0x20] sm:$0xff] %vm250, %v675
    %677 = vst.msk [vmem:[#allocation3 + $0x18] sm:$0xff] %vm252, %v675
    %v678 = vld [vmem:[#allocation2 + $0x50] sm:$0xff]
    %v679 = vld [vmem:[#allocation2 + $0x58] sm:$0xff]
    %v681 = vsel %vm63, %v675, 0
    %683 = vmatpush.msra.mxu0 0.0
    %684 = vmatpush.msra.mxu0 0.0
    %685 = vmatpush.msra.mxu0 0.0
    %686 = vmatpush.msra.mxu0 0.0
    %687 = vmatpush.msra.mxu0 0.0
    %688 = vmatpush.msra.mxu0 0.0
    %689 = vmatpush.msra.mxu0 0.0
    %690 = vmatpush.msra.mxu0 0.0
    %691 = vmatpush.msra.mxu0 %v200
    %692 = vmatpush.msra.mxu0 %v198
    %693 = vmatpush.msra.mxu0 %v196
    %694 = vmatpush.msra.mxu0 %v194
    %695 = vmatpush.msra.mxu0 %v192
    %696 = vmatpush.msra.mxu0 %v190
    %697 = vmatpush.msra.mxu0 %v188
    %698 = vmatpush.msra.mxu0 %v186
    %699 = vmatmul.f32.gmra.mxu0 %v681
    %v700 = vpop.f32.mrf.mxu0
    %v701 = vadd.f32 0.0, %v700
    %702 = vdwg.mxu0
    %703 = vmatpush.msra.mxu0 0.0
    %704 = vmatpush.msra.mxu0 0.0
    %705 = vmatpush.msra.mxu0 0.0
    %706 = vmatpush.msra.mxu0 0.0
    %707 = vmatpush.msra.mxu0 0.0
    %708 = vmatpush.msra.mxu0 0.0
    %709 = vmatpush.msra.mxu0 0.0
    %710 = vmatpush.msra.mxu0 0.0
    %711 = vmatpush.msra.mxu0 %v201
    %712 = vmatpush.msra.mxu0 %v199
    %713 = vmatpush.msra.mxu0 %v197
    %714 = vmatpush.msra.mxu0 %v195
    %715 = vmatpush.msra.mxu0 %v193
    %716 = vmatpush.msra.mxu0 %v191
    %717 = vmatpush.msra.mxu0 %v189
    %718 = vmatpush.msra.mxu0 %v187
    %719 = vmatmul.f32.gmra.mxu0 %v681
    %v720 = vpop.f32.mrf.mxu0
    %v721 = vadd.f32 0.0, %v720
    %722 = vdwg.mxu0
    %v723 = vadd.f32 %v678, %v701
    %v724 = vadd.f32 %v679, %v721
    %v725 = vxor.u32 %v723, 2147483648
    %v726 = vxor.u32 %v724, 2147483648
    %v727 = vmul.f32 %v725, 1.442695
    %v728 = vpow.pop %v727
    %v729 = vmul.f32 %v726, 1.442695
    %v730 = vpow.pop %v729
    %v731 = vadd.f32 %v728, 1.0
    %v732 = vadd.f32 %v730, 1.0
    %v733 = vrcp.pop %v731
    %v734 = vmul.f32 %v731, %v733
    %v735 = vsub.f32 1.0, %v734
    %v736 = vmul.f32 %v733, %v735
    %v737 = vadd.f32 %v733, %v736
    %vm738 = vweird.f32 %v731
    %vm739 = vweird.f32 %v733
    %vm740 = vmor %vm738, %vm739
    %v741 = vsel %vm740, %v733, %v737
    %v742 = vand.u32 2147483647, %v731
    %vm743 = vcmp.eq.f32.partialorder %v742, 8.507059e+37
    %v744 = vand.u32 %v731, 2147483648
    %v745 = vor.u32 1.1754944e-38, %v744
    %v746 = vsel %vm743, %v745, %v741
    %v747 = vmul.f32 1.0, %v746
    %v748 = vrcp.pop %v732
    %v749 = vmul.f32 %v732, %v748
    %v750 = vsub.f32 1.0, %v749
    %v751 = vmul.f32 %v748, %v750
    %v752 = vadd.f32 %v748, %v751
    %vm753 = vweird.f32 %v732
    %vm754 = vweird.f32 %v748
    %vm755 = vmor %vm753, %vm754
    %v756 = vsel %vm755, %v748, %v752
    %v757 = vand.u32 2147483647, %v732
    %vm758 = vcmp.eq.f32.partialorder %v757, 8.507059e+37
    %v759 = vand.u32 %v732, 2147483648
    %v760 = vor.u32 1.1754944e-38, %v759
    %v761 = vsel %vm758, %v760, %v756
    %v762 = vmul.f32 1.0, %v761
    %v763 = vtanh.pop %v724
    %v764 = vmul.f32 %v747, %v669
    %766 = vrot.lane.b32.xlu0 %v763, 64
    %v767 = vpop.permute.xlu0 %766
    %v769 = vmul.f32 %v747, %v767
    %771 = vrot.lane.b32.xlu0 %v769, 64
    %v772 = vpop.permute.xlu0 %771
    %v774 = vadd.f32 %v764, %v772
    %v775 = vtanh.pop %v774
    %777 = vrot.lane.b32.xlu0 %v775, 64
    %v778 = vpop.permute.xlu0 %777
    %v780 = vmul.f32 %v762, %v778
    %781 = vst.msk [vmem:[#allocation3 + $0x28] sm:$0xff] %vm250, %v780
    %782 = vst.msk [vmem:[#allocation3 + $0x10] sm:$0xff] %vm252, %v780
    %v783 = vld [vmem:[#allocation2 + $0x60] sm:$0xff]
    %v784 = vld [vmem:[#allocation2 + $0x68] sm:$0xff]
    %v786 = vsel %vm63, %v780, 0
    %788 = vmatpush.msra.mxu0 0.0
    %789 = vmatpush.msra.mxu0 0.0
    %790 = vmatpush.msra.mxu0 0.0
    %791 = vmatpush.msra.mxu0 0.0
    %792 = vmatpush.msra.mxu0 0.0
    %793 = vmatpush.msra.mxu0 0.0
    %794 = vmatpush.msra.mxu0 0.0
    %795 = vmatpush.msra.mxu0 0.0
    %796 = vmatpush.msra.mxu0 %v200
    %797 = vmatpush.msra.mxu0 %v198
    %798 = vmatpush.msra.mxu0 %v196
    %799 = vmatpush.msra.mxu0 %v194
    %800 = vmatpush.msra.mxu0 %v192
    %801 = vmatpush.msra.mxu0 %v190
    %802 = vmatpush.msra.mxu0 %v188
    %803 = vmatpush.msra.mxu0 %v186
    %804 = vmatmul.f32.gmra.mxu0 %v786
    %v805 = vpop.f32.mrf.mxu0
    %v806 = vadd.f32 0.0, %v805
    %807 = vdwg.mxu0
    %808 = vmatpush.msra.mxu0 0.0
    %809 = vmatpush.msra.mxu0 0.0
    %810 = vmatpush.msra.mxu0 0.0
    %811 = vmatpush.msra.mxu0 0.0
    %812 = vmatpush.msra.mxu0 0.0
    %813 = vmatpush.msra.mxu0 0.0
    %814 = vmatpush.msra.mxu0 0.0
    %815 = vmatpush.msra.mxu0 0.0
    %816 = vmatpush.msra.mxu0 %v201
    %817 = vmatpush.msra.mxu0 %v199
    %818 = vmatpush.msra.mxu0 %v197
    %819 = vmatpush.msra.mxu0 %v195
    %820 = vmatpush.msra.mxu0 %v193
    %821 = vmatpush.msra.mxu0 %v191
    %822 = vmatpush.msra.mxu0 %v189
    %823 = vmatpush.msra.mxu0 %v187
    %824 = vmatmul.f32.gmra.mxu0 %v786
    %v825 = vpop.f32.mrf.mxu0
    %v826 = vadd.f32 0.0, %v825
    %827 = vdwg.mxu0
    %v828 = vadd.f32 %v783, %v806
    %v829 = vadd.f32 %v784, %v826
    %v830 = vxor.u32 %v828, 2147483648
    %v831 = vxor.u32 %v829, 2147483648
    %v832 = vmul.f32 %v830, 1.442695
    %v833 = vpow.pop %v832
    %v834 = vmul.f32 %v831, 1.442695
    %v835 = vpow.pop %v834
    %v836 = vadd.f32 %v833, 1.0
    %v837 = vadd.f32 %v835, 1.0
    %v838 = vrcp.pop %v836
    %v839 = vmul.f32 %v836, %v838
    %v840 = vsub.f32 1.0, %v839
    %v841 = vmul.f32 %v838, %v840
    %v842 = vadd.f32 %v838, %v841
    %vm843 = vweird.f32 %v836
    %vm844 = vweird.f32 %v838
    %vm845 = vmor %vm843, %vm844
    %v846 = vsel %vm845, %v838, %v842
    %v847 = vand.u32 2147483647, %v836
    %vm848 = vcmp.eq.f32.partialorder %v847, 8.507059e+37
    %v849 = vand.u32 %v836, 2147483648
    %v850 = vor.u32 1.1754944e-38, %v849
    %v851 = vsel %vm848, %v850, %v846
    %v852 = vmul.f32 1.0, %v851
    %v853 = vrcp.pop %v837
    %v854 = vmul.f32 %v837, %v853
    %v855 = vsub.f32 1.0, %v854
    %v856 = vmul.f32 %v853, %v855
    %v857 = vadd.f32 %v853, %v856
    %vm858 = vweird.f32 %v837
    %vm859 = vweird.f32 %v853
    %vm860 = vmor %vm858, %vm859
    %v861 = vsel %vm860, %v853, %v857
    %v862 = vand.u32 2147483647, %v837
    %vm863 = vcmp.eq.f32.partialorder %v862, 8.507059e+37
    %v864 = vand.u32 %v837, 2147483648
    %v865 = vor.u32 1.1754944e-38, %v864
    %v866 = vsel %vm863, %v865, %v861
    %v867 = vmul.f32 1.0, %v866
    %v868 = vtanh.pop %v829
    %v869 = vmul.f32 %v852, %v774
    %871 = vrot.lane.b32.xlu0 %v868, 64
    %v872 = vpop.permute.xlu0 %871
    %v874 = vmul.f32 %v852, %v872
    %876 = vrot.lane.b32.xlu0 %v874, 64
    %v877 = vpop.permute.xlu0 %876
    %v879 = vadd.f32 %v869, %v877
    %v880 = vtanh.pop %v879
    %882 = vrot.lane.b32.xlu0 %v880, 64
    %v883 = vpop.permute.xlu0 %882
    %v885 = vmul.f32 %v867, %v883
    %886 = vst.msk [vmem:[#allocation3 + $0x30] sm:$0xff] %vm250, %v885
    %887 = vst.msk [vmem:[#allocation3 + $0x8] sm:$0xff] %vm252, %v885
    %v888 = vld [vmem:[#allocation2 + $0x70] sm:$0xff]
    %v889 = vld [vmem:[#allocation2 + $0x78] sm:$0xff]
    %v891 = vsel %vm63, %v885, 0
    %893 = vmatpush.msra.mxu0 0.0
    %894 = vmatpush.msra.mxu0 0.0
    %895 = vmatpush.msra.mxu0 0.0
    %896 = vmatpush.msra.mxu0 0.0
    %897 = vmatpush.msra.mxu0 0.0
    %898 = vmatpush.msra.mxu0 0.0
    %899 = vmatpush.msra.mxu0 0.0
    %900 = vmatpush.msra.mxu0 0.0
    %901 = vmatpush.msra.mxu0 %v200
    %902 = vmatpush.msra.mxu0 %v198
    %903 = vmatpush.msra.mxu0 %v196
    %904 = vmatpush.msra.mxu0 %v194
    %905 = vmatpush.msra.mxu0 %v192
    %906 = vmatpush.msra.mxu0 %v190
    %907 = vmatpush.msra.mxu0 %v188
    %908 = vmatpush.msra.mxu0 %v186
    %909 = vmatmul.f32.gmra.mxu0 %v891
    %v910 = vpop.f32.mrf.mxu0
    %v911 = vadd.f32 0.0, %v910
    %912 = vdwg.mxu0
    %913 = vmatpush.msra.mxu0 0.0
    %914 = vmatpush.msra.mxu0 0.0
    %915 = vmatpush.msra.mxu0 0.0
    %916 = vmatpush.msra.mxu0 0.0
    %917 = vmatpush.msra.mxu0 0.0
    %918 = vmatpush.msra.mxu0 0.0
    %919 = vmatpush.msra.mxu0 0.0
    %920 = vmatpush.msra.mxu0 0.0
    %921 = vmatpush.msra.mxu0 %v201
    %922 = vmatpush.msra.mxu0 %v199
    %923 = vmatpush.msra.mxu0 %v197
    %924 = vmatpush.msra.mxu0 %v195
    %925 = vmatpush.msra.mxu0 %v193
    %926 = vmatpush.msra.mxu0 %v191
    %927 = vmatpush.msra.mxu0 %v189
    %928 = vmatpush.msra.mxu0 %v187
    %929 = vmatmul.f32.gmra.mxu0 %v891
    %v930 = vpop.f32.mrf.mxu0
    %v931 = vadd.f32 0.0, %v930
    %932 = vdwg.mxu0
    %v933 = vadd.f32 %v888, %v911
    %v934 = vadd.f32 %v889, %v931
    %v935 = vxor.u32 %v933, 2147483648
    %v936 = vxor.u32 %v934, 2147483648
    %v937 = vmul.f32 %v935, 1.442695
    %v938 = vpow.pop %v937
    %v939 = vmul.f32 %v936, 1.442695
    %v940 = vpow.pop %v939
    %v941 = vadd.f32 %v938, 1.0
    %v942 = vadd.f32 %v940, 1.0
    %v943 = vrcp.pop %v941
    %v944 = vmul.f32 %v941, %v943
    %v945 = vsub.f32 1.0, %v944
    %v946 = vmul.f32 %v943, %v945
    %v947 = vadd.f32 %v943, %v946
    %vm948 = vweird.f32 %v941
    %vm949 = vweird.f32 %v943
    %vm950 = vmor %vm948, %vm949
    %v951 = vsel %vm950, %v943, %v947
    %v952 = vand.u32 2147483647, %v941
    %vm953 = vcmp.eq.f32.partialorder %v952, 8.507059e+37
    %v954 = vand.u32 %v941, 2147483648
    %v955 = vor.u32 1.1754944e-38, %v954
    %v956 = vsel %vm953, %v955, %v951
    %v957 = vmul.f32 1.0, %v956
    %v958 = vrcp.pop %v942
    %v959 = vmul.f32 %v942, %v958
    %v960 = vsub.f32 1.0, %v959
    %v961 = vmul.f32 %v958, %v960
    %v962 = vadd.f32 %v958, %v961
    %vm963 = vweird.f32 %v942
    %vm964 = vweird.f32 %v958
    %vm965 = vmor %vm963, %vm964
    %v966 = vsel %vm965, %v958, %v962
    %v967 = vand.u32 2147483647, %v942
    %vm968 = vcmp.eq.f32.partialorder %v967, 8.507059e+37
    %v969 = vand.u32 %v942, 2147483648
    %v970 = vor.u32 1.1754944e-38, %v969
    %v971 = vsel %vm968, %v970, %v966
    %v972 = vmul.f32 1.0, %v971
    %v973 = vtanh.pop %v934
    %v974 = vmul.f32 %v957, %v879
    %976 = vrot.lane.b32.xlu0 %v973, 64
    %v977 = vpop.permute.xlu0 %976
    %v979 = vmul.f32 %v957, %v977
    %981 = vrot.lane.b32.xlu0 %v979, 64
    %v982 = vpop.permute.xlu0 %981
    %v984 = vadd.f32 %v974, %v982
    %v985 = vtanh.pop %v984
    %987 = vrot.lane.b32.xlu0 %v985, 64
    %v988 = vpop.permute.xlu0 %987
    %v990 = vmul.f32 %v972, %v988
    %991 = vst.msk [vmem:[#allocation3 + $0x38] sm:$0xff] %vm250, %v990
    %992 = vst.msk [vmem:[#allocation3] sm:$0xff] %vm252, %v990
    %v993 = vld [vmem:[#allocation3] sm:$0xff]
    %v994 = vld [vmem:[#allocation3 + $0x8] sm:$0xff]
    %v995 = vld [vmem:[#allocation3 + $0x10] sm:$0xff]
    %v996 = vld [vmem:[#allocation3 + $0x18] sm:$0xff]
    %v997 = vld [vmem:[#allocation3 + $0x20] sm:$0xff]
    %v998 = vld [vmem:[#allocation3 + $0x28] sm:$0xff]
    %v999 = vld [vmem:[#allocation3 + $0x30] sm:$0xff]
    %v1000 = vld [vmem:[#allocation3 + $0x38] sm:$0xff]
    %v1001 = vld [vmem:[%s4] sm:$0xff]
    %v1002 = vld [vmem:[%s4 + $0x8] sm:$0xff]
    %v1003 = vld [vmem:[%s4 + $0x10] sm:$0xff]
    %v1004 = vld [vmem:[%s4 + $0x18] sm:$0xff]
    %v1005 = vld [vmem:[%s4 + $0x20] sm:$0xff]
    %v1006 = vld [vmem:[%s4 + $0x28] sm:$0xff]
    %v1007 = vld [vmem:[%s4 + $0x30] sm:$0xff]
    %v1008 = vld [vmem:[%s4 + $0x38] sm:$0xff]
    %v1009 = vld [vmem:[%s6] sm:$0x1]
    %v1011 = vperm.slane %v1009, 0
    %v1014 = vsel %vm63, %v993, 0
    %v1017 = vsel %vm63, %v994, 0
    %v1020 = vsel %vm63, %v995, 0
    %v1023 = vsel %vm63, %v996, 0
    %v1026 = vsel %vm63, %v997, 0
    %v1029 = vsel %vm63, %v998, 0
    %v1032 = vsel %vm63, %v999, 0
    %v1035 = vsel %vm63, %v1000, 0
    %1037 = vmatpush.msra.mxu0 0.0
    %1038 = vmatpush.msra.mxu0 0.0
    %1039 = vmatpush.msra.mxu0 0.0
    %1040 = vmatpush.msra.mxu0 0.0
    %1041 = vmatpush.msra.mxu0 0.0
    %1042 = vmatpush.msra.mxu0 0.0
    %1043 = vmatpush.msra.mxu0 0.0
    %1044 = vmatpush.msra.mxu0 0.0
    %1045 = vmatpush.msra.mxu0 %v1008
    %1046 = vmatpush.msra.mxu0 %v1007
    %1047 = vmatpush.msra.mxu0 %v1006
    %1048 = vmatpush.msra.mxu0 %v1005
    %1049 = vmatpush.msra.mxu0 %v1004
    %1050 = vmatpush.msra.mxu0 %v1003
    %1051 = vmatpush.msra.mxu0 %v1002
    %1052 = vmatpush.msra.mxu0 %v1001
    %1053 = vmatmul.f32.gmra.mxu0 %v1014
    %v1054 = vpop.f32.mrf.mxu0
    %v1055 = vadd.f32 %v1011, %v1054
    %1056 = vmatmul.f32.gmra.mxu0 %v1017
    %v1057 = vpop.f32.mrf.mxu0
    %v1058 = vadd.f32 %v1011, %v1057
    %1059 = vmatmul.f32.gmra.mxu0 %v1020
    %v1060 = vpop.f32.mrf.mxu0
    %v1061 = vadd.f32 %v1011, %v1060
    %1062 = vmatmul.f32.gmra.mxu0 %v1023
    %v1063 = vpop.f32.mrf.mxu0
    %v1064 = vadd.f32 %v1011, %v1063
    %1065 = vmatmul.f32.gmra.mxu0 %v1026
    %v1066 = vpop.f32.mrf.mxu0
    %v1067 = vadd.f32 %v1011, %v1066
    %1068 = vmatmul.f32.gmra.mxu0 %v1029
    %v1069 = vpop.f32.mrf.mxu0
    %v1070 = vadd.f32 %v1011, %v1069
    %1071 = vmatmul.f32.gmra.mxu0 %v1032
    %v1072 = vpop.f32.mrf.mxu0
    %v1073 = vadd.f32 %v1011, %v1072
    %1074 = vmatmul.f32.gmra.mxu0 %v1035
    %v1075 = vpop.f32.mrf.mxu0
    %v1076 = vadd.f32 %v1011, %v1075
    %1077 = vdwg.mxu0
    %1078 = vst [vmem:[#allocation4] sm:$0xff] %v1055
    %1079 = vst [vmem:[#allocation4 + $0x8] sm:$0xff] %v1058
    %1080 = vst [vmem:[#allocation4 + $0x10] sm:$0xff] %v1061
    %1081 = vst [vmem:[#allocation4 + $0x18] sm:$0xff] %v1064
    %1082 = vst [vmem:[#allocation4 + $0x20] sm:$0xff] %v1067
    %1083 = vst [vmem:[#allocation4 + $0x28] sm:$0xff] %v1070
    %1084 = vst [vmem:[#allocation4 + $0x30] sm:$0xff] %v1073
    %1085 = vst [vmem:[#allocation4 + $0x38] sm:$0xff] %v1076
    %v1086 = vld [vmem:[%s5] sm:$0xff]
    %v1087 = vld [vmem:[%s5 + $0x8] sm:$0xff]
    %v1088 = vld [vmem:[%s5 + $0x10] sm:$0xff]
    %v1089 = vld [vmem:[%s5 + $0x18] sm:$0xff]
    %v1090 = vld [vmem:[#allocation4 + $0x38] sm:$0xff]
    %v1091 = vxor.u32 %v1090, 2147483648
    %v1092 = vmul.f32 %v1091, 1.442695
    %v1093 = vpow.pop %v1092
    %v1094 = vadd.f32 %v1093, 1.0
    %v1095 = vrcp.pop %v1094
    %v1096 = vmul.f32 %v1094, %v1095
    %v1097 = vsub.f32 1.0, %v1096
    %v1098 = vmul.f32 %v1095, %v1097
    %v1099 = vadd.f32 %v1095, %v1098
    %vm1100 = vweird.f32 %v1094
    %vm1101 = vweird.f32 %v1095
    %vm1102 = vmor %vm1100, %vm1101
    %v1103 = vsel %vm1102, %v1095, %v1099
    %v1104 = vand.u32 2147483647, %v1094
    %vm1105 = vcmp.eq.f32.partialorder %v1104, 8.507059e+37
    %v1106 = vand.u32 %v1094, 2147483648
    %v1107 = vor.u32 1.1754944e-38, %v1106
    %v1108 = vsel %vm1105, %v1107, %v1103
    %v1109 = vmul.f32 1.0, %v1108
    %v1110 = vtanh.pop %v1090
    %1112 = vrot.lane.b32.xlu0 %v1110, 32
    %v1113 = vpop.permute.xlu0 %1112
    %v1115 = vmul.f32 %v1109, %v1113
    %v1116 = vtanh.pop %v1115
    %1118 = vrot.lane.b32.xlu0 %v1116, 64
    %v1119 = vpop.permute.xlu0 %1118
    %v1121 = vmul.f32 %v1109, %v1119
    %v1122 = vld [vmem:[#allocation4 + $0x30] sm:$0xff]
    %1124 = vrot.lane.b32.xlu0 %v1121, 64
    %v1125 = vpop.permute.xlu0 %1124
    %v1126 = vsel %vm250, %v1125, 0
    %1128 = vmatpush.msra.mxu0 0.0
    %1129 = vmatpush.msra.mxu0 0.0
    %1130 = vmatpush.msra.mxu0 0.0
    %1131 = vmatpush.msra.mxu0 0.0
    %1132 = vmatpush.msra.mxu0 0.0
    %1133 = vmatpush.msra.mxu0 0.0
    %1134 = vmatpush.msra.mxu0 0.0
    %1135 = vmatpush.msra.mxu0 0.0
    %1136 = vmatpush.msra.mxu0 0.0
    %1137 = vmatpush.msra.mxu0 0.0
    %1138 = vmatpush.msra.mxu0 0.0
    %1139 = vmatpush.msra.mxu0 0.0
    %1140 = vmatpush.msra.mxu0 %v1089
    %1141 = vmatpush.msra.mxu0 %v1088
    %1142 = vmatpush.msra.mxu0 %v1087
    %1143 = vmatpush.msra.mxu0 %v1086
    %1144 = vmatmul.f32.gmra.mxu0 %v1126
    %v1145 = vpop.f32.mrf.mxu0
    %v1146 = vadd.f32 0.0, %v1145
    %1147 = vdwg.mxu0
    %v1148 = vadd.f32 %v1122, %v1146
    %v1149 = vxor.u32 %v1148, 2147483648
    %v1150 = vmul.f32 %v1149, 1.442695
    %v1151 = vpow.pop %v1150
    %v1152 = vadd.f32 %v1151, 1.0
    %v1153 = vrcp.pop %v1152
    %v1154 = vmul.f32 %v1152, %v1153
    %v1155 = vsub.f32 1.0, %v1154
    %v1156 = vmul.f32 %v1153, %v1155
    %v1157 = vadd.f32 %v1153, %v1156
    %vm1158 = vweird.f32 %v1152
    %vm1159 = vweird.f32 %v1153
    %vm1160 = vmor %vm1158, %vm1159
    %v1161 = vsel %vm1160, %v1153, %v1157
    %v1162 = vand.u32 2147483647, %v1152
    %vm1163 = vcmp.eq.f32.partialorder %v1162, 8.507059e+37
    %v1164 = vand.u32 %v1152, 2147483648
    %v1165 = vor.u32 1.1754944e-38, %v1164
    %v1166 = vsel %vm1163, %v1165, %v1161
    %v1167 = vmul.f32 1.0, %v1166
    %v1168 = vtanh.pop %v1148
    %1170 = vrot.lane.b32.xlu0 %v1115, 32
    %v1171 = vpop.permute.xlu0 %1170
    %v1173 = vmul.f32 %v1167, %v1171
    %1175 = vrot.lane.b32.xlu0 %v1168, 32
    %v1176 = vpop.permute.xlu0 %1175
    %v1178 = vmul.f32 %v1167, %v1176
    %1180 = vrot.lane.b32.xlu0 %v1178, 32
    %v1181 = vpop.permute.xlu0 %1180
    %v1183 = vadd.f32 %v1173, %v1181
    %v1184 = vtanh.pop %v1183
    %1186 = vrot.lane.b32.xlu0 %v1184, 32
    %v1187 = vpop.permute.xlu0 %1186
    %v1189 = vmul.f32 %v1167, %v1187
    %v1190 = vld [vmem:[#allocation4 + $0x28] sm:$0xff]
    %1192 = vrot.lane.b32.xlu0 %v1189, 64
    %v1193 = vpop.permute.xlu0 %1192
    %v1194 = vsel %vm250, %v1193, 0
    %1196 = vmatpush.msra.mxu0 0.0
    %1197 = vmatpush.msra.mxu0 0.0
    %1198 = vmatpush.msra.mxu0 0.0
    %1199 = vmatpush.msra.mxu0 0.0
    %1200 = vmatpush.msra.mxu0 0.0
    %1201 = vmatpush.msra.mxu0 0.0
    %1202 = vmatpush.msra.mxu0 0.0
    %1203 = vmatpush.msra.mxu0 0.0
    %1204 = vmatpush.msra.mxu0 0.0
    %1205 = vmatpush.msra.mxu0 0.0
    %1206 = vmatpush.msra.mxu0 0.0
    %1207 = vmatpush.msra.mxu0 0.0
    %1208 = vmatpush.msra.mxu0 %v1089
    %1209 = vmatpush.msra.mxu0 %v1088
    %1210 = vmatpush.msra.mxu0 %v1087
    %1211 = vmatpush.msra.mxu0 %v1086
    %1212 = vmatmul.f32.gmra.mxu0 %v1194
    %v1213 = vpop.f32.mrf.mxu0
    %v1214 = vadd.f32 0.0, %v1213
    %1215 = vdwg.mxu0
    %v1216 = vadd.f32 %v1190, %v1214
    %v1217 = vxor.u32 %v1216, 2147483648
    %v1218 = vmul.f32 %v1217, 1.442695
    %v1219 = vpow.pop %v1218
    %v1220 = vadd.f32 %v1219, 1.0
    %v1221 = vrcp.pop %v1220
    %v1222 = vmul.f32 %v1220, %v1221
    %v1223 = vsub.f32 1.0, %v1222
    %v1224 = vmul.f32 %v1221, %v1223
    %v1225 = vadd.f32 %v1221, %v1224
    %vm1226 = vweird.f32 %v1220
    %vm1227 = vweird.f32 %v1221
    %vm1228 = vmor %vm1226, %vm1227
    %v1229 = vsel %vm1228, %v1221, %v1225
    %v1230 = vand.u32 2147483647, %v1220
    %vm1231 = vcmp.eq.f32.partialorder %v1230, 8.507059e+37
    %v1232 = vand.u32 %v1220, 2147483648
    %v1233 = vor.u32 1.1754944e-38, %v1232
    %v1234 = vsel %vm1231, %v1233, %v1229
    %v1235 = vmul.f32 1.0, %v1234
    %v1236 = vtanh.pop %v1216
    %v1237 = vmul.f32 %v1235, %v1183
    %1239 = vrot.lane.b32.xlu0 %v1236, 32
    %v1240 = vpop.permute.xlu0 %1239
    %v1242 = vmul.f32 %v1235, %v1240
    %1244 = vrot.lane.b32.xlu0 %v1242, 32
    %v1245 = vpop.permute.xlu0 %1244
    %v1247 = vadd.f32 %v1237, %v1245
    %v1248 = vtanh.pop %v1247
    %1250 = vrot.lane.b32.xlu0 %v1248, 32
    %v1251 = vpop.permute.xlu0 %1250
    %v1253 = vmul.f32 %v1235, %v1251
    %v1254 = vld [vmem:[#allocation4 + $0x20] sm:$0xff]
    %1256 = vrot.lane.b32.xlu0 %v1253, 64
    %v1257 = vpop.permute.xlu0 %1256
    %v1258 = vsel %vm250, %v1257, 0
    %1260 = vmatpush.msra.mxu0 0.0
    %1261 = vmatpush.msra.mxu0 0.0
    %1262 = vmatpush.msra.mxu0 0.0
    %1263 = vmatpush.msra.mxu0 0.0
    %1264 = vmatpush.msra.mxu0 0.0
    %1265 = vmatpush.msra.mxu0 0.0
    %1266 = vmatpush.msra.mxu0 0.0
    %1267 = vmatpush.msra.mxu0 0.0
    %1268 = vmatpush.msra.mxu0 0.0
    %1269 = vmatpush.msra.mxu0 0.0
    %1270 = vmatpush.msra.mxu0 0.0
    %1271 = vmatpush.msra.mxu0 0.0
    %1272 = vmatpush.msra.mxu0 %v1089
    %1273 = vmatpush.msra.mxu0 %v1088
    %1274 = vmatpush.msra.mxu0 %v1087
    %1275 = vmatpush.msra.mxu0 %v1086
    %1276 = vmatmul.f32.gmra.mxu0 %v1258
    %v1277 = vpop.f32.mrf.mxu0
    %v1278 = vadd.f32 0.0, %v1277
    %1279 = vdwg.mxu0
    %v1280 = vadd.f32 %v1254, %v1278
    %v1281 = vxor.u32 %v1280, 2147483648
    %v1282 = vmul.f32 %v1281, 1.442695
    %v1283 = vpow.pop %v1282
    %v1284 = vadd.f32 %v1283, 1.0
    %v1285 = vrcp.pop %v1284
    %v1286 = vmul.f32 %v1284, %v1285
    %v1287 = vsub.f32 1.0, %v1286
    %v1288 = vmul.f32 %v1285, %v1287
    %v1289 = vadd.f32 %v1285, %v1288
    %vm1290 = vweird.f32 %v1284
    %vm1291 = vweird.f32 %v1285
    %vm1292 = vmor %vm1290, %vm1291
    %v1293 = vsel %vm1292, %v1285, %v1289
    %v1294 = vand.u32 2147483647, %v1284
    %vm1295 = vcmp.eq.f32.partialorder %v1294, 8.507059e+37
    %v1296 = vand.u32 %v1284, 2147483648
    %v1297 = vor.u32 1.1754944e-38, %v1296
    %v1298 = vsel %vm1295, %v1297, %v1293
    %v1299 = vmul.f32 1.0, %v1298
    %v1300 = vtanh.pop %v1280
    %v1301 = vmul.f32 %v1299, %v1247
    %1303 = vrot.lane.b32.xlu0 %v1300, 32
    %v1304 = vpop.permute.xlu0 %1303
    %v1306 = vmul.f32 %v1299, %v1304
    %1308 = vrot.lane.b32.xlu0 %v1306, 32
    %v1309 = vpop.permute.xlu0 %1308
    %v1311 = vadd.f32 %v1301, %v1309
    %v1312 = vtanh.pop %v1311
    %1314 = vrot.lane.b32.xlu0 %v1312, 32
    %v1315 = vpop.permute.xlu0 %1314
    %v1317 = vmul.f32 %v1299, %v1315
    %v1318 = vld [vmem:[#allocation4 + $0x18] sm:$0xff]
    %1320 = vrot.lane.b32.xlu0 %v1317, 64
    %v1321 = vpop.permute.xlu0 %1320
    %v1322 = vsel %vm250, %v1321, 0
    %1324 = vmatpush.msra.mxu0 0.0
    %1325 = vmatpush.msra.mxu0 0.0
    %1326 = vmatpush.msra.mxu0 0.0
    %1327 = vmatpush.msra.mxu0 0.0
    %1328 = vmatpush.msra.mxu0 0.0
    %1329 = vmatpush.msra.mxu0 0.0
    %1330 = vmatpush.msra.mxu0 0.0
    %1331 = vmatpush.msra.mxu0 0.0
    %1332 = vmatpush.msra.mxu0 0.0
    %1333 = vmatpush.msra.mxu0 0.0
    %1334 = vmatpush.msra.mxu0 0.0
    %1335 = vmatpush.msra.mxu0 0.0
    %1336 = vmatpush.msra.mxu0 %v1089
    %1337 = vmatpush.msra.mxu0 %v1088
    %1338 = vmatpush.msra.mxu0 %v1087
    %1339 = vmatpush.msra.mxu0 %v1086
    %1340 = vmatmul.f32.gmra.mxu0 %v1322
    %v1341 = vpop.f32.mrf.mxu0
    %v1342 = vadd.f32 0.0, %v1341
    %1343 = vdwg.mxu0
    %v1344 = vadd.f32 %v1318, %v1342
    %v1345 = vxor.u32 %v1344, 2147483648
    %v1346 = vmul.f32 %v1345, 1.442695
    %v1347 = vpow.pop %v1346
    %v1348 = vadd.f32 %v1347, 1.0
    %v1349 = vrcp.pop %v1348
    %v1350 = vmul.f32 %v1348, %v1349
    %v1351 = vsub.f32 1.0, %v1350
    %v1352 = vmul.f32 %v1349, %v1351
    %v1353 = vadd.f32 %v1349, %v1352
    %vm1354 = vweird.f32 %v1348
    %vm1355 = vweird.f32 %v1349
    %vm1356 = vmor %vm1354, %vm1355
    %v1357 = vsel %vm1356, %v1349, %v1353
    %v1358 = vand.u32 2147483647, %v1348
    %vm1359 = vcmp.eq.f32.partialorder %v1358, 8.507059e+37
    %v1360 = vand.u32 %v1348, 2147483648
    %v1361 = vor.u32 1.1754944e-38, %v1360
    %v1362 = vsel %vm1359, %v1361, %v1357
    %v1363 = vmul.f32 1.0, %v1362
    %v1364 = vtanh.pop %v1344
    %v1365 = vmul.f32 %v1363, %v1311
    %1367 = vrot.lane.b32.xlu0 %v1364, 32
    %v1368 = vpop.permute.xlu0 %1367
    %v1370 = vmul.f32 %v1363, %v1368
    %1372 = vrot.lane.b32.xlu0 %v1370, 32
    %v1373 = vpop.permute.xlu0 %1372
    %v1375 = vadd.f32 %v1365, %v1373
    %v1376 = vtanh.pop %v1375
    %1378 = vrot.lane.b32.xlu0 %v1376, 32
    %v1379 = vpop.permute.xlu0 %1378
    %v1381 = vmul.f32 %v1363, %v1379
    %v1382 = vld [vmem:[#allocation4 + $0x10] sm:$0xff]
    %1384 = vrot.lane.b32.xlu0 %v1381, 64
    %v1385 = vpop.permute.xlu0 %1384
    %v1386 = vsel %vm250, %v1385, 0
    %1388 = vmatpush.msra.mxu0 0.0
    %1389 = vmatpush.msra.mxu0 0.0
    %1390 = vmatpush.msra.mxu0 0.0
    %1391 = vmatpush.msra.mxu0 0.0
    %1392 = vmatpush.msra.mxu0 0.0
    %1393 = vmatpush.msra.mxu0 0.0
    %1394 = vmatpush.msra.mxu0 0.0
    %1395 = vmatpush.msra.mxu0 0.0
    %1396 = vmatpush.msra.mxu0 0.0
    %1397 = vmatpush.msra.mxu0 0.0
    %1398 = vmatpush.msra.mxu0 0.0
    %1399 = vmatpush.msra.mxu0 0.0
    %1400 = vmatpush.msra.mxu0 %v1089
    %1401 = vmatpush.msra.mxu0 %v1088
    %1402 = vmatpush.msra.mxu0 %v1087
    %1403 = vmatpush.msra.mxu0 %v1086
    %1404 = vmatmul.f32.gmra.mxu0 %v1386
    %v1405 = vpop.f32.mrf.mxu0
    %v1406 = vadd.f32 0.0, %v1405
    %1407 = vdwg.mxu0
    %v1408 = vadd.f32 %v1382, %v1406
    %v1409 = vxor.u32 %v1408, 2147483648
    %v1410 = vmul.f32 %v1409, 1.442695
    %v1411 = vpow.pop %v1410
    %v1412 = vadd.f32 %v1411, 1.0
    %v1413 = vrcp.pop %v1412
    %v1414 = vmul.f32 %v1412, %v1413
    %v1415 = vsub.f32 1.0, %v1414
    %v1416 = vmul.f32 %v1413, %v1415
    %v1417 = vadd.f32 %v1413, %v1416
    %vm1418 = vweird.f32 %v1412
    %vm1419 = vweird.f32 %v1413
    %vm1420 = vmor %vm1418, %vm1419
    %v1421 = vsel %vm1420, %v1413, %v1417
    %v1422 = vand.u32 2147483647, %v1412
    %vm1423 = vcmp.eq.f32.partialorder %v1422, 8.507059e+37
    %v1424 = vand.u32 %v1412, 2147483648
    %v1425 = vor.u32 1.1754944e-38, %v1424
    %v1426 = vsel %vm1423, %v1425, %v1421
    %v1427 = vmul.f32 1.0, %v1426
    %v1428 = vtanh.pop %v1408
    %v1429 = vmul.f32 %v1427, %v1375
    %1431 = vrot.lane.b32.xlu0 %v1428, 32
    %v1432 = vpop.permute.xlu0 %1431
    %v1434 = vmul.f32 %v1427, %v1432
    %1436 = vrot.lane.b32.xlu0 %v1434, 32
    %v1437 = vpop.permute.xlu0 %1436
    %v1439 = vadd.f32 %v1429, %v1437
    %v1440 = vtanh.pop %v1439
    %1442 = vrot.lane.b32.xlu0 %v1440, 32
    %v1443 = vpop.permute.xlu0 %1442
    %v1445 = vmul.f32 %v1427, %v1443
    %v1446 = vld [vmem:[#allocation4 + $0x8] sm:$0xff]
    %1448 = vrot.lane.b32.xlu0 %v1445, 64
    %v1449 = vpop.permute.xlu0 %1448
    %v1450 = vsel %vm250, %v1449, 0
    %1452 = vmatpush.msra.mxu0 0.0
    %1453 = vmatpush.msra.mxu0 0.0
    %1454 = vmatpush.msra.mxu0 0.0
    %1455 = vmatpush.msra.mxu0 0.0
    %1456 = vmatpush.msra.mxu0 0.0
    %1457 = vmatpush.msra.mxu0 0.0
    %1458 = vmatpush.msra.mxu0 0.0
    %1459 = vmatpush.msra.mxu0 0.0
    %1460 = vmatpush.msra.mxu0 0.0
    %1461 = vmatpush.msra.mxu0 0.0
    %1462 = vmatpush.msra.mxu0 0.0
    %1463 = vmatpush.msra.mxu0 0.0
    %1464 = vmatpush.msra.mxu0 %v1089
    %1465 = vmatpush.msra.mxu0 %v1088
    %1466 = vmatpush.msra.mxu0 %v1087
    %1467 = vmatpush.msra.mxu0 %v1086
    %1468 = vmatmul.f32.gmra.mxu0 %v1450
    %v1469 = vpop.f32.mrf.mxu0
    %v1470 = vadd.f32 0.0, %v1469
    %1471 = vdwg.mxu0
    %v1472 = vadd.f32 %v1446, %v1470
    %v1473 = vxor.u32 %v1472, 2147483648
    %v1474 = vmul.f32 %v1473, 1.442695
    %v1475 = vpow.pop %v1474
    %v1476 = vadd.f32 %v1475, 1.0
    %v1477 = vrcp.pop %v1476
    %v1478 = vmul.f32 %v1476, %v1477
    %v1479 = vsub.f32 1.0, %v1478
    %v1480 = vmul.f32 %v1477, %v1479
    %v1481 = vadd.f32 %v1477, %v1480
    %vm1482 = vweird.f32 %v1476
    %vm1483 = vweird.f32 %v1477
    %vm1484 = vmor %vm1482, %vm1483
    %v1485 = vsel %vm1484, %v1477, %v1481
    %v1486 = vand.u32 2147483647, %v1476
    %vm1487 = vcmp.eq.f32.partialorder %v1486, 8.507059e+37
    %v1488 = vand.u32 %v1476, 2147483648
    %v1489 = vor.u32 1.1754944e-38, %v1488
    %v1490 = vsel %vm1487, %v1489, %v1485
    %v1491 = vmul.f32 1.0, %v1490
    %v1492 = vtanh.pop %v1472
    %v1493 = vmul.f32 %v1491, %v1439
    %1495 = vrot.lane.b32.xlu0 %v1492, 32
    %v1496 = vpop.permute.xlu0 %1495
    %v1498 = vmul.f32 %v1491, %v1496
    %1500 = vrot.lane.b32.xlu0 %v1498, 32
    %v1501 = vpop.permute.xlu0 %1500
    %v1503 = vadd.f32 %v1493, %v1501
    %v1504 = vtanh.pop %v1503
    %1506 = vrot.lane.b32.xlu0 %v1504, 32
    %v1507 = vpop.permute.xlu0 %1506
    %v1509 = vmul.f32 %v1491, %v1507
    %v1510 = vld [vmem:[#allocation4] sm:$0xff]
    %1512 = vrot.lane.b32.xlu0 %v1509, 64
    %v1513 = vpop.permute.xlu0 %1512
    %v1514 = vsel %vm250, %v1513, 0
    %1516 = vmatpush.msra.mxu0 0.0
    %1517 = vmatpush.msra.mxu0 0.0
    %1518 = vmatpush.msra.mxu0 0.0
    %1519 = vmatpush.msra.mxu0 0.0
    %1520 = vmatpush.msra.mxu0 0.0
    %1521 = vmatpush.msra.mxu0 0.0
    %1522 = vmatpush.msra.mxu0 0.0
    %1523 = vmatpush.msra.mxu0 0.0
    %1524 = vmatpush.msra.mxu0 0.0
    %1525 = vmatpush.msra.mxu0 0.0
    %1526 = vmatpush.msra.mxu0 0.0
    %1527 = vmatpush.msra.mxu0 0.0
    %1528 = vmatpush.msra.mxu0 %v1089
    %1529 = vmatpush.msra.mxu0 %v1088
    %1530 = vmatpush.msra.mxu0 %v1087
    %1531 = vmatpush.msra.mxu0 %v1086
    %1532 = vmatmul.f32.gmra.mxu0 %v1514
    %v1533 = vpop.f32.mrf.mxu0
    %v1534 = vadd.f32 0.0, %v1533
    %1535 = vdwg.mxu0
    %v1536 = vadd.f32 %v1510, %v1534
    %v1537 = vxor.u32 %v1536, 2147483648
    %v1538 = vmul.f32 %v1537, 1.442695
    %v1539 = vpow.pop %v1538
    %v1540 = vadd.f32 %v1539, 1.0
    %v1541 = vrcp.pop %v1540
    %v1542 = vmul.f32 %v1540, %v1541
    %v1543 = vsub.f32 1.0, %v1542
    %v1544 = vmul.f32 %v1541, %v1543
    %v1545 = vadd.f32 %v1541, %v1544
    %vm1546 = vweird.f32 %v1540
    %vm1547 = vweird.f32 %v1541
    %vm1548 = vmor %vm1546, %vm1547
    %v1549 = vsel %vm1548, %v1541, %v1545
    %v1550 = vand.u32 2147483647, %v1540
    %vm1551 = vcmp.eq.f32.partialorder %v1550, 8.507059e+37
    %v1552 = vand.u32 %v1540, 2147483648
    %v1553 = vor.u32 1.1754944e-38, %v1552
    %v1554 = vsel %vm1551, %v1553, %v1549
    %v1555 = vmul.f32 1.0, %v1554
    %v1556 = vtanh.pop %v1536
    %v1557 = vmul.f32 %v1555, %v1503
    %1559 = vrot.lane.b32.xlu0 %v1556, 32
    %v1560 = vpop.permute.xlu0 %1559
    %v1562 = vmul.f32 %v1555, %v1560
    %1564 = vrot.lane.b32.xlu0 %v1562, 32
    %v1565 = vpop.permute.xlu0 %1564
    %v1567 = vadd.f32 %v1557, %v1565
    %v1568 = vtanh.pop %v1567
    %1570 = vrot.lane.b32.xlu0 %v1568, 32
    %v1571 = vpop.permute.xlu0 %1570
    %v1573 = vmul.f32 %v1555, %v1571
    %v1574 = vld [vmem:[%s7] sm:$0xff]
    %v1575 = vld [vmem:[%s7 + $0x8] sm:$0xff]
    %v1576 = vld [vmem:[%s7 + $0x10] sm:$0xff]
    %v1577 = vld [vmem:[%s7 + $0x18] sm:$0xff]
    %v1578 = vld [vmem:[%s8] sm:$0x1]
    %v1580 = vperm.slane %v1578, 0
    %1583 = vrot.lane.b32.xlu0 %v1573, 64
    %v1584 = vpop.permute.xlu0 %1583
    %v1585 = vsel %vm250, %v1584, 0
    %1587 = vmatpush.msra.mxu0 0.0
    %1588 = vmatpush.msra.mxu0 0.0
    %1589 = vmatpush.msra.mxu0 0.0
    %1590 = vmatpush.msra.mxu0 0.0
    %1591 = vmatpush.msra.mxu0 0.0
    %1592 = vmatpush.msra.mxu0 0.0
    %1593 = vmatpush.msra.mxu0 0.0
    %1594 = vmatpush.msra.mxu0 0.0
    %1595 = vmatpush.msra.mxu0 0.0
    %1596 = vmatpush.msra.mxu0 0.0
    %1597 = vmatpush.msra.mxu0 0.0
    %1598 = vmatpush.msra.mxu0 0.0
    %1599 = vmatpush.msra.mxu0 %v1577
    %1600 = vmatpush.msra.mxu0 %v1576
    %1601 = vmatpush.msra.mxu0 %v1575
    %1602 = vmatpush.msra.mxu0 %v1574
    %1603 = vmatmul.f32.gmra.mxu0 %v1585
    %v1604 = vpop.f32.mrf.mxu0
    %v1605 = vadd.f32 %v1580, %v1604
    %1606 = vdwg.mxu0
    %vm1607 = vcmask 64512
    %v1608 = vsel %vm1607, %v1605, -inf
    %1609 = vmax.xlane.f32.xlu0 %v1608
    %v1610 = vpop.xlane.xlu0 %1609
    %v1611 = vsub.f32 %v1605, %v1610
    %v1612 = vmul.f32 %v1611, 1.442695
    %v1613 = vpow.pop %v1612
    %v1614 = vsel %vm1607, %v1613, 0.0
    %1615 = vadd.xlane.f32.xlu0 %v1614
    %v1616 = vpop.xlane.xlu0 %1615
    %v1617 = vlog2.pop %v1616
    %v1618 = vmul.f32 %v1617, 0.6931472
    %v1619 = vsub.f32 %v1611, %v1618
    %1620 = vst.msk [vmem:[#allocation5] sm:$0xff] %vm1607, %v1619
    // Predicated region
    $region38: #{lstm_classifier_forward.1} parent=1 // pred_check
      _
    $region39: #{lstm_classifier_forward.1} parent=1 // pred_check_branch
      %1622 = sbr.rel (0) target = $region41
    $region40: #{lstm_classifier_forward.1} parent=1 // pred_region
      %1624 = vsyncadd [#allocation6], 0
      %s1626 = sshll.u32 [#allocation5], 4
      %s1627 = int_to_ptr.vmem [resolvable:$true] %s1626
      %s1628 = sshll.u32 %s9, 4
      %s1629 = int_to_ptr.hbm [resolvable:$true] %s1628
      %1631 = dma.vmem_to_hbm [thread:$0]  %s1627, 128, %s1629, [#allocation6]
    $region41: #{lstm_classifier_forward.1} parent=1 // pred_fallthru
      _
    // Predicated region
    $region42: #{lstm_classifier_forward.1} parent=1 // pred_check
      _
    $region43: #{lstm_classifier_forward.1} parent=1 // pred_check_branch
      %1633 = sbr.rel (0) target = $region45
    $region44: #{lstm_classifier_forward.1} parent=1 // pred_region
      %1635 = dma.done [#allocation6], 128
    $region45: #{lstm_classifier_forward.1} parent=1 // pred_fallthru
      _
    %1636 = vsyncpa [#allocation6], 1

</llo_original>
